<compile_context>
chip_gen: v7x
topology: tpu7x:2x2x1
jax: 0.10.0
libtpu: 0.0.40
codegen_flags: <defaults>
</compile_context>

<pallas_src>
import functools

import jax
import jax.numpy as jnp
import numpy as np
from jax.experimental import pallas as pl
from jax.experimental.pallas import tpu as pltpu

LANE = 128


# ----------------------------------------------------------------------------
# Host-side weight re-packing (done once, outside the kernel)
# ----------------------------------------------------------------------------
def _banded_conv_weight(w_hwio, in_cols, in_lane_stride, in_lanes, out_cols):
    """(3,3,Cin,Cout) -> (3, in_lanes, out_cols*Cout) block-Toeplitz weight.

    The activation row-vector it multiplies stores input column `w` channel `ci`
    at lane `w*in_lane_stride + ci`.  'same' padding along W is folded in: taps
    that fall outside [0, in_cols) get zero rows, as do all unused lanes.
    """
    kh, kw, cin, cout = w_hwio.shape
    w = np.asarray(w_hwio, np.float32)
    band = np.zeros((kh, in_lanes, out_cols * cout), np.float32)
    for dy in range(kh):
        for dx in range(kw):
            for j in range(out_cols):
                src = j + dx - 1
                if 0 <= src < in_cols:
                    r0 = src * in_lane_stride
                    band[dy, r0:r0 + cin, j * cout:(j + 1) * cout] = w[dy, dx]
    return band


def _classifier_weight(fc_w, fc_b, c2, hq, wq, in_lane_stride, row_block, lane_pad):
    """(feat_dim, ncls) Linear -> (hq*row_block, lane_pad) single-matmul weight.

    Kernel feature-slab layout: feat[b, i*row_block + j*in_lane_stride + c]
    PyTorch NCHW flatten:       f = c*hq*wq + i*wq + j
    Class dim zero-padded to lane_pad so the output store is lane-dense.
    """
    num_classes = fc_w.shape[1]
    w = np.asarray(fc_w, np.float32)
    fw = np.zeros((hq * row_block, lane_pad), np.float32)
    for i in range(hq):
        for j in range(wq):
            for c in range(c2):
                fw[i * row_block + j * in_lane_stride + c, :num_classes] = \
                    w[c * hq * wq + i * wq + j]
    fb = np.zeros((1, lane_pad), np.float32)
    fb[0, :num_classes] = np.asarray(fc_b, np.float32)
    return fw, fb


def prepare_kernel_params(params, in_channels, hw, num_classes, *,
                          mxu_dtype=jnp.float32):
    """Pack logical (PyTorch-equivalent) params into fused-kernel layouts."""
    assert len(params["conv_blocks"]) == 2, "fused kernel specialized to 2 blocks"
    (w1, sc1, bi1), (w2, sc2, bi2) = params["conv_blocks"]
    c1, c2 = int(w1.shape[-1]), int(w2.shape[-1])
    W1 = hw
    assert W1 % 4 == 0, "two 2x2 max-pools need spatial % 4 == 0"
    Wp = W1 // 2
    Hq = Wq = Wp // 2
    WPAD = max(LANE, ((W1 * in_channels + LANE - 1) // LANE) * LANE)
    L1 = W1 * c1
    L2 = Wp * c2
    NPAD = ((num_classes + LANE - 1) // LANE) * LANE

    band1 = _banded_conv_weight(w1, in_cols=W1, in_lane_stride=in_channels,
                                in_lanes=WPAD, out_cols=W1)
    band2 = _banded_conv_weight(w2, in_cols=Wp, in_lane_stride=2 * c1,
                                in_lanes=L1, out_cols=Wp)
    fcw, fcb = _classifier_weight(params["fc_w"], params["fc_b"], c2, Hq, Wq,
                                  in_lane_stride=2 * c2, row_block=L2,
                                  lane_pad=NPAD)
    return {
        "band1": jnp.asarray(band1, mxu_dtype),
        "band2": jnp.asarray(band2, mxu_dtype),
        "fcw": jnp.asarray(fcw, mxu_dtype),
        "fcb": jnp.asarray(fcb, jnp.float32),
        # BN (folded, eval mode) broadcast along the (column, cout) lane layout.
        "s1": jnp.asarray(np.tile(np.asarray(sc1, np.float32), W1)[None, :]),
        "t1": jnp.asarray(np.tile(np.asarray(bi1, np.float32), W1)[None, :]),
        "s2": jnp.asarray(np.tile(np.asarray(sc2, np.float32), Wp)[None, :]),
        "t2": jnp.asarray(np.tile(np.asarray(bi2, np.float32), Wp)[None, :]),
        "c1": c1, "c2": c2, "num_classes": num_classes,
        "mxu_dtype": mxu_dtype, "wpad": WPAD,
    }


# ----------------------------------------------------------------------------
# Fused kernel body: conv/BN/ReLU/pool x2 + Linear for one batch tile
# ----------------------------------------------------------------------------
def _fused_kernel(x_ref, w1_ref, s1_ref, t1_ref, w2_ref, s2_ref, t2_ref,
                  fw_ref, fb_ref, out_ref,
                  xp1, acc1, xp2, acc2, feat,
                  *, TB, H1, Hp, Hq, C1, C2, WPAD, L1, L2, mxu_dtype):
    f32 = jnp.float32

    def tap(xp, dy, nrows, width):
        # row `i` of conv output uses padded rows i+dy (dy = 0,1,2)
        rows = xp[:, dy:dy + nrows, :].reshape(TB * nrows, width)
        return rows.astype(mxu_dtype)

    # ---- block 1: conv3x3 ('same') + folded BN + ReLU ----------------------
    zrow1 = jnp.zeros((TB, 1, WPAD), xp1.dtype)
    xp1[:, 0:1, :] = zrow1                      # halo-only zero fill
    xp1[:, H1 + 1:H1 + 2, :] = zrow1
    xp1[:, 1:H1 + 1, :] = x_ref[...]            # lane-dense 128-wide store

    acc1[...] = jnp.dot(tap(xp1, 0, H1, WPAD), w1_ref[0], preferred_element_type=f32)
    acc1[...] += jnp.dot(tap(xp1, 1, H1, WPAD), w1_ref[1], preferred_element_type=f32)
    acc1[...] += jnp.dot(tap(xp1, 2, H1, WPAD), w1_ref[2], preferred_element_type=f32)
    acc1[...] = jnp.maximum(acc1[...] * s1_ref[...] + t1_ref[...], 0.0)

    # ---- maxpool 2x2 #1: strided row pairs + rolled lane pairs -------------
    rmax = jnp.maximum(acc1[pl.ds(0, TB * H1 // 2, 2), :],
                       acc1[pl.ds(1, TB * H1 // 2, 2), :])
    # lane-pair max; the wrapped trailing C1 lanes hold finite junk that
    # band2's zero weight rows annihilate -> full-width dense store below.
    pooled1 = jnp.maximum(rmax, pltpu.roll(rmax, shift=L1 - C1, axis=1))

    zrow2 = jnp.zeros((TB, 1, L1), xp2.dtype)
    xp2[:, 0:1, :] = zrow2
    xp2[:, Hp + 1:Hp + 2, :] = zrow2
    xp2[:, 1:Hp + 1, :] = pooled1.reshape(TB, Hp, L1).astype(xp2.dtype)

    # ---- block 2: conv3x3 ('same') + folded BN + ReLU ----------------------
    acc2[...] = jnp.dot(tap(xp2, 0, Hp, L1), w2_ref[0], preferred_element_type=f32)
    acc2[...] += jnp.dot(tap(xp2, 1, Hp, L1), w2_ref[1], preferred_element_type=f32)
    acc2[...] += jnp.dot(tap(xp2, 2, Hp, L1), w2_ref[2], preferred_element_type=f32)
    acc2[...] = jnp.maximum(acc2[...] * s2_ref[...] + t2_ref[...], 0.0)

    # ---- maxpool 2x2 #2 -> (TB, Hq*L2) feature slab -------------------------
    for i in range(Hq):
        r0 = acc2[pl.ds(2 * i, TB, Hp), :]      # row 2i   of every sample
        r1 = acc2[pl.ds(2 * i + 1, TB, Hp), :]  # row 2i+1 of every sample
        rm = jnp.maximum(r0, r1)
        feat[:, i * L2:(i + 1) * L2] = jnp.maximum(
            rm, pltpu.roll(rm, shift=L2 - C2, axis=1)).astype(feat.dtype)

    # ---- linear classifier: ONE matmul over the whole feature slab ---------
    scores = jnp.dot(feat[...].astype(mxu_dtype), fw_ref[...],
                     preferred_element_type=f32)
    out_ref[...] = scores + fb_ref[...]


# ----------------------------------------------------------------------------
# Wrapper: batch-tiled grid, resident weights, VMEM budgeting
# ----------------------------------------------------------------------------
def convnet_plus_classifier_forward(x_nchw, kp, *, batch_tile=8):
    B, Cin, H, W = map(int, x_nchw.shape)
    C1, C2 = kp["c1"], kp["c2"]
    NCLS = kp["num_classes"]
    mxu_dtype = kp["mxu_dtype"]
    H1, W1 = H, W
    Hp, Wp = H1 // 2, W1 // 2
    Hq = Hp // 2
    WPAD = kp["wpad"]
    L1 = W1 * C1
    L2 = Wp * C2
    NPAD = int(kp["fcw"].shape[-1])
    assert H1 % 4 == 0 and W1 % 4 == 0, "two 2x2 max-pools need spatial % 4 == 0"
    assert kp["band1"].shape == (3, WPAD, L1) and kp["band2"].shape == (3, L1, L2)

    TB = max(8, ((int(batch_tile) + 7) // 8) * 8)   # aligned (TB, 128) out block
    G = int(pl.cdiv(B, TB))
    Bp = G * TB

    # NCHW -> channels-last row vectors (lane = w*Cin + c), zero-padded to WPAD
    # lanes and Bp samples.  TODO(synk): fold this relayout into the kernel.
    x_rows = jnp.transpose(x_nchw, (0, 2, 3, 1)).reshape(B, H1, W1 * Cin)
    x_rows = jnp.pad(x_rows, ((0, Bp - B), (0, 0), (0, WPAD - W1 * Cin)))
    x_rows = x_rows.astype(jnp.float32)

    # ---- VMEM budget (scratch + resident weights + double-buffered I/O) ----
    VMEM_LIMIT = 32 * 1024 * 1024          # safe scoped limit on v5e/v6e/v7x
    scratch_elems = (TB * (H1 + 2) * WPAD + TB * H1 * L1 +
                     TB * (Hp + 2) * L1 + TB * Hp * L2 + TB * Hq * L2)
    wbytes = sum(int(np.prod(kp[k].shape)) * kp[k].dtype.itemsize
                 for k in ("band1", "band2", "fcw", "fcb", "s1", "t1", "s2", "t2"))
    io_bytes = 2 * (TB * H1 * WPAD + TB * NPAD) * 4
    assert scratch_elems * 4 + 2 * wbytes + io_bytes < VMEM_LIMIT, \
        "batch_tile too large for the VMEM budget; lower batch_tile"

    kernel = functools.partial(
        _fused_kernel, TB=TB, H1=H1, Hp=Hp, Hq=Hq, C1=C1, C2=C2,
        WPAD=WPAD, L1=L1, L2=L2, mxu_dtype=mxu_dtype)

    const3 = lambda b: (0, 0, 0)
    const2 = lambda b: (0, 0)
    in_specs = [
        pl.BlockSpec((TB, H1, WPAD), lambda b: (b, 0, 0)),   # x rows (tiled over B)
        pl.BlockSpec((3, WPAD, L1), const3),                 # band1 (resident)
        pl.BlockSpec((1, L1), const2),                       # s1
        pl.BlockSpec((1, L1), const2),                       # t1
        pl.BlockSpec((3, L1, L2), const3),                   # band2 (resident)
        pl.BlockSpec((1, L2), const2),                       # s2
        pl.BlockSpec((1, L2), const2),                       # t2
        pl.BlockSpec((Hq * L2, NPAD), const2),               # fcw (resident)
        pl.BlockSpec((1, NPAD), const2),                     # fcb
    ]
    out_specs = pl.BlockSpec((TB, NPAD), lambda b: (b, 0))

    scratch_shapes = [
        pltpu.VMEM((TB, H1 + 2, WPAD), jnp.float32),   # xp1 : H-padded block-1 input
        pltpu.VMEM((TB * H1, L1), jnp.float32),        # acc1: conv1 accumulator / act1
        pltpu.VMEM((TB, Hp + 2, L1), jnp.float32),     # xp2 : H-padded block-2 input
        pltpu.VMEM((TB * Hp, L2), jnp.float32),        # acc2: conv2 accumulator / act2
        pltpu.VMEM((TB, Hq * L2), jnp.float32),        # feat: classifier LHS slab
    ]

    out_pad = pl.pallas_call(
        kernel,
        grid=(G,),
        in_specs=in_specs,
        out_specs=out_specs,
        out_shape=jax.ShapeDtypeStruct((Bp, NPAD), jnp.float32),
        scratch_shapes=scratch_shapes,
        compiler_params=pltpu.CompilerParams(
            dimension_semantics=("parallel",),      # megacore-shard batch tiles
            vmem_limit_bytes=VMEM_LIMIT,
        ),
    )(x_rows, kp["band1"], kp["s1"], kp["t1"],
      kp["band2"], kp["s2"], kp["t2"], kp["fcw"], kp["fcb"])
    return out_pad[:B, :NCLS]


# ----------------------------------------------------------------------------
# Deterministic parameter initialization (logical / PyTorch-equivalent params)
# ----------------------------------------------------------------------------
def init_params(key, in_channels, channels, hw, num_classes):
    # TODO(synk): convnet.create_model / classifier.create_model internals are
    # not provided; Conv3x3(no bias)+BN(eval)+ReLU+MaxPool2x2 blocks and a
    # single Linear classifier are assumed.
    params = {"conv_blocks": []}
    cin, spatial = in_channels, hw
    for cout in channels:
        key, kw, kg, kb, km, kv = jax.random.split(key, 6)
        w = jax.random.normal(kw, (3, 3, cin, cout), jnp.float32) * 0.1
        gamma = 1.0 + 0.1 * jax.random.normal(kg, (cout,), jnp.float32)
        beta = 0.1 * jax.random.normal(kb, (cout,), jnp.float32)
        mean = 0.1 * jax.random.normal(km, (cout,), jnp.float32)
        var = 1.0 + 0.1 * jax.random.uniform(kv, (cout,), jnp.float32)
        scale = gamma / jnp.sqrt(var + 1e-5)      # fold BN (eval mode)
        bias = beta - mean * scale
        params["conv_blocks"].append((w, scale, bias))
        cin = cout
        spatial //= 2
    feat_dim = cin * spatial * spatial
    key, kfw, kfb = jax.random.split(key, 3)
    params["fc_w"] = jax.random.normal(kfw, (feat_dim, num_classes), jnp.float32) * 0.05
    params["fc_b"] = 0.01 * jax.random.normal(kfb, (num_classes,), jnp.float32)
    return params


# ----------------------------------------------------------------------------
# Pure-JAX reference (for validation)
# ----------------------------------------------------------------------------
def reference_forward(x_nchw, params):
    x = jnp.transpose(x_nchw, (0, 2, 3, 1))
    for (w, scale, bias) in params["conv_blocks"]:
        x = jax.lax.conv_general_dilated(
            x, w, window_strides=(1, 1), padding="SAME",
            dimension_numbers=("NHWC", "HWIO", "NHWC"),
            precision=jax.lax.Precision.HIGHEST)
        x = jnp.maximum(x * scale + bias, 0.0)
        b, h, wd, c = x.shape
        x = jnp.max(x.reshape(b, h // 2, 2, wd // 2, 2, c), axis=(2, 4))
    feats = jnp.transpose(x, (0, 3, 1, 2)).reshape(x.shape[0], -1)  # NCHW flatten
    return jnp.dot(feats, params["fc_w"],
                   precision=jax.lax.Precision.HIGHEST) + params["fc_b"]


if __name__ == "__main__":
    key = jax.random.PRNGKey(0)
    key, kx = jax.random.split(key)

    batch, in_channels, hw = 16, 3, 16
    channels = [8, 16]                           # two conv blocks
    num_classes = 5
    batch_tile = 8                               # grid = (2,): pipelined / megacore

    x = jax.random.normal(kx, (batch, in_channels, hw, hw), jnp.float32)  # NCHW
    params = init_params(key, in_channels, channels, hw, num_classes)
    ref = reference_forward(x, params)
    jax.block_until_ready(ref)

    # ---- f32 MXU operands: exact-parity path, tight tolerance --------------
    kp32 = prepare_kernel_params(params, in_channels, hw, num_classes,
                                 mxu_dtype=jnp.float32)
    out32 = convnet_plus_classifier_forward(x, kp32, batch_tile=batch_tile)
    jax.block_until_ready(out32)
    assert out32.shape == (batch, num_classes)
    err32 = float(jnp.max(jnp.abs(out32 - ref)))
    assert err32 < 1e-3, f"f32 kernel mismatch vs reference: max abs err = {err32}"

    # ---- bf16 MXU operands (v6e/v7x rate), f32 accumulation/epilogue -------
    kpbf = prepare_kernel_params(params, in_channels, hw, num_classes,
                                 mxu_dtype=jnp.bfloat16)
    outbf = convnet_plus_classifier_forward(x, kpbf, batch_tile=batch_tile)
    jax.block_until_ready(outbf)
    errbf = float(jnp.max(jnp.abs(outbf - ref)))
    assert errbf < 5e-2, f"bf16 kernel mismatch vs reference: max abs err = {errbf}"

    print("KERNEL_OK")
</pallas_src>

<mosaic_0001>
module attributes {stable_mosaic.version = 11 : i64} {
  func.func @_fused_kernel(%arg0: i32, %arg1: memref<8x16x128xf32, #tpu.memory_space<vmem>>, %arg2: memref<3x128x128xf32, #tpu.memory_space<vmem>>, %arg3: memref<1x128xf32, #tpu.memory_space<vmem>>, %arg4: memref<1x128xf32, #tpu.memory_space<vmem>>, %arg5: memref<3x128x128xf32, #tpu.memory_space<vmem>>, %arg6: memref<1x128xf32, #tpu.memory_space<vmem>>, %arg7: memref<1x128xf32, #tpu.memory_space<vmem>>, %arg8: memref<512x128xf32, #tpu.memory_space<vmem>>, %arg9: memref<1x128xf32, #tpu.memory_space<vmem>>, %arg10: memref<8x128xf32, #tpu.memory_space<vmem>>, %arg11: memref<8x18x128xf32, #tpu.memory_space<vmem>>, %arg12: memref<128x128xf32, #tpu.memory_space<vmem>>, %arg13: memref<8x10x128xf32, #tpu.memory_space<vmem>>, %arg14: memref<64x128xf32, #tpu.memory_space<vmem>>, %arg15: memref<8x512xf32, #tpu.memory_space<vmem>>) attributes {dimension_semantics = [#tpu.dimension_semantics<parallel>], iteration_bounds = array<i64: 2>, scalar_prefetch = 0 : i64, scratch_operands = 5 : i64, tpu.core_type = #tpu.core_type<tc>, window_params = [{transform_indices = @transform_0, window_bounds = array<i64: 8, 16, 128>}, {pipeline_mode = #tpu.pipeline_mode<synchronous>, transform_indices = @transform_1, window_bounds = array<i64: 3, 128, 128>}, {pipeline_mode = #tpu.pipeline_mode<synchronous>, transform_indices = @transform_2, window_bounds = array<i64: 1, 128>}, {pipeline_mode = #tpu.pipeline_mode<synchronous>, transform_indices = @transform_3, window_bounds = array<i64: 1, 128>}, {pipeline_mode = #tpu.pipeline_mode<synchronous>, transform_indices = @transform_4, window_bounds = array<i64: 3, 128, 128>}, {pipeline_mode = #tpu.pipeline_mode<synchronous>, transform_indices = @transform_5, window_bounds = array<i64: 1, 128>}, {pipeline_mode = #tpu.pipeline_mode<synchronous>, transform_indices = @transform_6, window_bounds = array<i64: 1, 128>}, {pipeline_mode = #tpu.pipeline_mode<synchronous>, transform_indices = @transform_7, window_bounds = array<i64: 512, 128>}, {pipeline_mode = #tpu.pipeline_mode<synchronous>, transform_indices = @transform_8, window_bounds = array<i64: 1, 128>}, {transform_indices = @transform_9, window_bounds = array<i64: 8, 128>}]} {
    %cst = arith.constant 0.000000e+00 : f32
    %0 = vector.broadcast %cst : f32 to vector<8x1x128xf32>
    %c0 = arith.constant 0 : index
    %c0_0 = arith.constant 0 : index
    %c0_1 = arith.constant 0 : index
    %1 = vector.load %arg11[%c0, %c0_0, %c0_1] : memref<8x18x128xf32, #tpu.memory_space<vmem>>, vector<8x1x128xf32>
    tpu.vector_store %arg11[%c0, %c0_0, %c0_1], %0 {strides = array<i32>} : memref<8x18x128xf32, #tpu.memory_space<vmem>>, vector<8x1x128xf32>,
    %c0_2 = arith.constant 0 : index
    %c17 = arith.constant 17 : index
    %c0_3 = arith.constant 0 : index
    %2 = vector.load %arg11[%c0_2, %c17, %c0_3] : memref<8x18x128xf32, #tpu.memory_space<vmem>>, vector<8x1x128xf32>
    tpu.vector_store %arg11[%c0_2, %c17, %c0_3], %0 {strides = array<i32>} : memref<8x18x128xf32, #tpu.memory_space<vmem>>, vector<8x1x128xf32>,
    %c0_4 = arith.constant 0 : index
    %c0_5 = arith.constant 0 : index
    %c0_6 = arith.constant 0 : index
    %3 = vector.load %arg1[%c0_4, %c0_5, %c0_6] : memref<8x16x128xf32, #tpu.memory_space<vmem>>, vector<8x16x128xf32>
    %c0_7 = arith.constant 0 : index
    %c1 = arith.constant 1 : index
    %c0_8 = arith.constant 0 : index
    %4 = vector.load %arg11[%c0_7, %c1, %c0_8] : memref<8x18x128xf32, #tpu.memory_space<vmem>>, vector<8x16x128xf32>
    tpu.vector_store %arg11[%c0_7, %c1, %c0_8], %3 {strides = array<i32>} : memref<8x18x128xf32, #tpu.memory_space<vmem>>, vector<8x16x128xf32>,
    %c0_9 = arith.constant 0 : index
    %c0_10 = arith.constant 0 : index
    %c0_11 = arith.constant 0 : index
    %5 = vector.load %arg11[%c0_9, %c0_10, %c0_11] : memref<8x18x128xf32, #tpu.memory_space<vmem>>, vector<8x16x128xf32>
    %6 = vector.shape_cast %5 : vector<8x16x128xf32> to vector<128x128xf32>
    %c0_12 = arith.constant 0 : index
    %c0_13 = arith.constant 0 : index
    %c0_14 = arith.constant 0 : index
    %7 = vector.load %arg2[%c0_12, %c0_13, %c0_14] : memref<3x128x128xf32, #tpu.memory_space<vmem>>, vector<1x128x128xf32>
    %8 = vector.shape_cast %7 : vector<1x128x128xf32> to vector<128x128xf32>
    %cst_15 = arith.constant dense<0.000000e+00> : vector<128x128xf32>
    %9 = tpu.matmul %6, %8, %cst_15 {dimension_numbers = #tpu.dot_dimension_numbers<[1], [0], [0], [1], [0, 0, 1, 1], [], []>} : vector<128x128xf32>, vector<128x128xf32>, vector<128x128xf32> -> vector<128x128xf32>
    %c0_16 = arith.constant 0 : index
    %c0_17 = arith.constant 0 : index
    %10 = vector.load %arg12[%c0_16, %c0_17] : memref<128x128xf32, #tpu.memory_space<vmem>>, vector<128x128xf32>
    tpu.vector_store %arg12[%c0_16, %c0_17], %9 {strides = array<i32>} : memref<128x128xf32, #tpu.memory_space<vmem>>, vector<128x128xf32>,
    %c0_18 = arith.constant 0 : index
    %c0_19 = arith.constant 0 : index
    %11 = vector.load %arg12[%c0_18, %c0_19] : memref<128x128xf32, #tpu.memory_space<vmem>>, vector<128x128xf32>
    %c0_20 = arith.constant 0 : index
    %c1_21 = arith.constant 1 : index
    %c0_22 = arith.constant 0 : index
    %12 = vector.load %arg11[%c0_20, %c1_21, %c0_22] : memref<8x18x128xf32, #tpu.memory_space<vmem>>, vector<8x16x128xf32>
    %13 = vector.shape_cast %12 : vector<8x16x128xf32> to vector<128x128xf32>
    %c1_23 = arith.constant 1 : index
    %c0_24 = arith.constant 0 : index
    %c0_25 = arith.constant 0 : index
    %14 = vector.load %arg2[%c1_23, %c0_24, %c0_25] : memref<3x128x128xf32, #tpu.memory_space<vmem>>, vector<1x128x128xf32>
    %15 = vector.shape_cast %14 : vector<1x128x128xf32> to vector<128x128xf32>
    %cst_26 = arith.constant dense<0.000000e+00> : vector<128x128xf32>
    %16 = tpu.matmul %13, %15, %cst_26 {dimension_numbers = #tpu.dot_dimension_numbers<[1], [0], [0], [1], [0, 0, 1, 1], [], []>} : vector<128x128xf32>, vector<128x128xf32>, vector<128x128xf32> -> vector<128x128xf32>
    %17 = arith.addf %11, %16 : vector<128x128xf32>
    %c0_27 = arith.constant 0 : index
    %c0_28 = arith.constant 0 : index
    %18 = vector.load %arg12[%c0_27, %c0_28] : memref<128x128xf32, #tpu.memory_space<vmem>>, vector<128x128xf32>
    tpu.vector_store %arg12[%c0_27, %c0_28], %17 {strides = array<i32>} : memref<128x128xf32, #tpu.memory_space<vmem>>, vector<128x128xf32>,
    %c0_29 = arith.constant 0 : index
    %c0_30 = arith.constant 0 : index
    %19 = vector.load %arg12[%c0_29, %c0_30] : memref<128x128xf32, #tpu.memory_space<vmem>>, vector<128x128xf32>
    %c0_31 = arith.constant 0 : index
    %c2 = arith.constant 2 : index
    %c0_32 = arith.constant 0 : index
    %20 = vector.load %arg11[%c0_31, %c2, %c0_32] : memref<8x18x128xf32, #tpu.memory_space<vmem>>, vector<8x16x128xf32>
    %21 = vector.shape_cast %20 : vector<8x16x128xf32> to vector<128x128xf32>
    %c2_33 = arith.constant 2 : index
    %c0_34 = arith.constant 0 : index
    %c0_35 = arith.constant 0 : index
    %22 = vector.load %arg2[%c2_33, %c0_34, %c0_35] : memref<3x128x128xf32, #tpu.memory_space<vmem>>, vector<1x128x128xf32>
    %23 = vector.shape_cast %22 : vector<1x128x128xf32> to vector<128x128xf32>
    %cst_36 = arith.constant dense<0.000000e+00> : vector<128x128xf32>
    %24 = tpu.matmul %21, %23, %cst_36 {dimension_numbers = #tpu.dot_dimension_numbers<[1], [0], [0], [1], [0, 0, 1, 1], [], []>} : vector<128x128xf32>, vector<128x128xf32>, vector<128x128xf32> -> vector<128x128xf32>
    %25 = arith.addf %19, %24 : vector<128x128xf32>
    %c0_37 = arith.constant 0 : index
    %c0_38 = arith.constant 0 : index
    %26 = vector.load %arg12[%c0_37, %c0_38] : memref<128x128xf32, #tpu.memory_space<vmem>>, vector<128x128xf32>
    tpu.vector_store %arg12[%c0_37, %c0_38], %25 {strides = array<i32>} : memref<128x128xf32, #tpu.memory_space<vmem>>, vector<128x128xf32>,
    %c0_39 = arith.constant 0 : index
    %c0_40 = arith.constant 0 : index
    %27 = vector.load %arg12[%c0_39, %c0_40] : memref<128x128xf32, #tpu.memory_space<vmem>>, vector<128x128xf32>
    %c0_41 = arith.constant 0 : index
    %c0_42 = arith.constant 0 : index
    %28 = vector.load %arg3[%c0_41, %c0_42] : memref<1x128xf32, #tpu.memory_space<vmem>>, vector<1x128xf32>
    %29 = vector.broadcast %28 : vector<1x128xf32> to vector<128x128xf32>
    %30 = arith.mulf %27, %29 : vector<128x128xf32>
    %c0_43 = arith.constant 0 : index
    %c0_44 = arith.constant 0 : index
    %31 = vector.load %arg4[%c0_43, %c0_44] : memref<1x128xf32, #tpu.memory_space<vmem>>, vector<1x128xf32>
    %32 = vector.broadcast %31 : vector<1x128xf32> to vector<128x128xf32>
    %33 = arith.addf %30, %32 : vector<128x128xf32>
    %cst_45 = arith.constant 0.000000e+00 : f32
    %34 = vector.broadcast %cst_45 : f32 to vector<128x128xf32>
    %35 = arith.maximumf %33, %34 : vector<128x128xf32>
    %c0_46 = arith.constant 0 : index
    %c0_47 = arith.constant 0 : index
    %36 = vector.load %arg12[%c0_46, %c0_47] : memref<128x128xf32, #tpu.memory_space<vmem>>, vector<128x128xf32>
    tpu.vector_store %arg12[%c0_46, %c0_47], %35 {strides = array<i32>} : memref<128x128xf32, #tpu.memory_space<vmem>>, vector<128x128xf32>,
    %c0_48 = arith.constant 0 : index
    %c0_49 = arith.constant 0 : index
    %37 = tpu.strided_load %arg12[%c0_48, %c0_49] {strides = array<i32: 2, 1>} : memref<128x128xf32, #tpu.memory_space<vmem>>, vector<64x128xf32>
    %c1_50 = arith.constant 1 : index
    %c0_51 = arith.constant 0 : index
    %38 = tpu.strided_load %arg12[%c1_50, %c0_51] {strides = array<i32: 2, 1>} : memref<128x128xf32, #tpu.memory_space<vmem>>, vector<64x128xf32>
    %39 = arith.maximumf %37, %38 : vector<64x128xf32>
    %c120_i32 = arith.constant 120 : i32
    %40 = tpu.dynamic_rotate %39 by %c120_i32 dim 1 : vector<64x128xf32>, i32 -> vector<64x128xf32>
    %41 = arith.maximumf %39, %40 : vector<64x128xf32>
    %cst_52 = arith.constant 0.000000e+00 : f32
    %42 = vector.broadcast %cst_52 : f32 to vector<8x1x128xf32>
    %c0_53 = arith.constant 0 : index
    %c0_54 = arith.constant 0 : index
    %c0_55 = arith.constant 0 : index
    %43 = vector.load %arg13[%c0_53, %c0_54, %c0_55] : memref<8x10x128xf32, #tpu.memory_space<vmem>>, vector<8x1x128xf32>
    tpu.vector_store %arg13[%c0_53, %c0_54, %c0_55], %42 {strides = array<i32>} : memref<8x10x128xf32, #tpu.memory_space<vmem>>, vector<8x1x128xf32>,
    %c0_56 = arith.constant 0 : index
    %c9 = arith.constant 9 : index
    %c0_57 = arith.constant 0 : index
    %44 = vector.load %arg13[%c0_56, %c9, %c0_57] : memref<8x10x128xf32, #tpu.memory_space<vmem>>, vector<8x1x128xf32>
    tpu.vector_store %arg13[%c0_56, %c9, %c0_57], %42 {strides = array<i32>} : memref<8x10x128xf32, #tpu.memory_space<vmem>>, vector<8x1x128xf32>,
    %45 = vector.shape_cast %41 : vector<64x128xf32> to vector<8x8x128xf32>
    %c0_58 = arith.constant 0 : index
    %c1_59 = arith.constant 1 : index
    %c0_60 = arith.constant 0 : index
    %46 = vector.load %arg13[%c0_58, %c1_59, %c0_60] : memref<8x10x128xf32, #tpu.memory_space<vmem>>, vector<8x8x128xf32>
    tpu.vector_store %arg13[%c0_58, %c1_59, %c0_60], %45 {strides = array<i32>} : memref<8x10x128xf32, #tpu.memory_space<vmem>>, vector<8x8x128xf32>,
    %c0_61 = arith.constant 0 : index
    %c0_62 = arith.constant 0 : index
    %c0_63 = arith.constant 0 : index
    %47 = vector.load %arg13[%c0_61, %c0_62, %c0_63] : memref<8x10x128xf32, #tpu.memory_space<vmem>>, vector<8x8x128xf32>
    %48 = vector.shape_cast %47 : vector<8x8x128xf32> to vector<64x128xf32>
    %c0_64 = arith.constant 0 : index
    %c0_65 = arith.constant 0 : index
    %c0_66 = arith.constant 0 : index
    %49 = vector.load %arg5[%c0_64, %c0_65, %c0_66] : memref<3x128x128xf32, #tpu.memory_space<vmem>>, vector<1x128x128xf32>
    %50 = vector.shape_cast %49 : vector<1x128x128xf32> to vector<128x128xf32>
    %cst_67 = arith.constant dense<0.000000e+00> : vector<64x128xf32>
    %51 = tpu.matmul %48, %50, %cst_67 {dimension_numbers = #tpu.dot_dimension_numbers<[1], [0], [0], [1], [0, 0, 1, 1], [], []>} : vector<64x128xf32>, vector<128x128xf32>, vector<64x128xf32> -> vector<64x128xf32>
    %c0_68 = arith.constant 0 : index
    %c0_69 = arith.constant 0 : index
    %52 = vector.load %arg14[%c0_68, %c0_69] : memref<64x128xf32, #tpu.memory_space<vmem>>, vector<64x128xf32>
    tpu.vector_store %arg14[%c0_68, %c0_69], %51 {strides = array<i32>} : memref<64x128xf32, #tpu.memory_space<vmem>>, vector<64x128xf32>,
    %c0_70 = arith.constant 0 : index
    %c0_71 = arith.constant 0 : index
    %53 = vector.load %arg14[%c0_70, %c0_71] : memref<64x128xf32, #tpu.memory_space<vmem>>, vector<64x128xf32>
    %c0_72 = arith.constant 0 : index
    %c1_73 = arith.constant 1 : index
    %c0_74 = arith.constant 0 : index
    %54 = vector.load %arg13[%c0_72, %c1_73, %c0_74] : memref<8x10x128xf32, #tpu.memory_space<vmem>>, vector<8x8x128xf32>
    %55 = vector.shape_cast %54 : vector<8x8x128xf32> to vector<64x128xf32>
    %c1_75 = arith.constant 1 : index
    %c0_76 = arith.constant 0 : index
    %c0_77 = arith.constant 0 : index
    %56 = vector.load %arg5[%c1_75, %c0_76, %c0_77] : memref<3x128x128xf32, #tpu.memory_space<vmem>>, vector<1x128x128xf32>
    %57 = vector.shape_cast %56 : vector<1x128x128xf32> to vector<128x128xf32>
    %cst_78 = arith.constant dense<0.000000e+00> : vector<64x128xf32>
    %58 = tpu.matmul %55, %57, %cst_78 {dimension_numbers = #tpu.dot_dimension_numbers<[1], [0], [0], [1], [0, 0, 1, 1], [], []>} : vector<64x128xf32>, vector<128x128xf32>, vector<64x128xf32> -> vector<64x128xf32>
    %59 = arith.addf %53, %58 : vector<64x128xf32>
    %c0_79 = arith.constant 0 : index
    %c0_80 = arith.constant 0 : index
    %60 = vector.load %arg14[%c0_79, %c0_80] : memref<64x128xf32, #tpu.memory_space<vmem>>, vector<64x128xf32>
    tpu.vector_store %arg14[%c0_79, %c0_80], %59 {strides = array<i32>} : memref<64x128xf32, #tpu.memory_space<vmem>>, vector<64x128xf32>,
    %c0_81 = arith.constant 0 : index
    %c0_82 = arith.constant 0 : index
    %61 = vector.load %arg14[%c0_81, %c0_82] : memref<64x128xf32, #tpu.memory_space<vmem>>, vector<64x128xf32>
    %c0_83 = arith.constant 0 : index
    %c2_84 = arith.constant 2 : index
    %c0_85 = arith.constant 0 : index
    %62 = vector.load %arg13[%c0_83, %c2_84, %c0_85] : memref<8x10x128xf32, #tpu.memory_space<vmem>>, vector<8x8x128xf32>
    %63 = vector.shape_cast %62 : vector<8x8x128xf32> to vector<64x128xf32>
    %c2_86 = arith.constant 2 : index
    %c0_87 = arith.constant 0 : index
    %c0_88 = arith.constant 0 : index
    %64 = vector.load %arg5[%c2_86, %c0_87, %c0_88] : memref<3x128x128xf32, #tpu.memory_space<vmem>>, vector<1x128x128xf32>
    %65 = vector.shape_cast %64 : vector<1x128x128xf32> to vector<128x128xf32>
    %cst_89 = arith.constant dense<0.000000e+00> : vector<64x128xf32>
    %66 = tpu.matmul %63, %65, %cst_89 {dimension_numbers = #tpu.dot_dimension_numbers<[1], [0], [0], [1], [0, 0, 1, 1], [], []>} : vector<64x128xf32>, vector<128x128xf32>, vector<64x128xf32> -> vector<64x128xf32>
    %67 = arith.addf %61, %66 : vector<64x128xf32>
    %c0_90 = arith.constant 0 : index
    %c0_91 = arith.constant 0 : index
    %68 = vector.load %arg14[%c0_90, %c0_91] : memref<64x128xf32, #tpu.memory_space<vmem>>, vector<64x128xf32>
    tpu.vector_store %arg14[%c0_90, %c0_91], %67 {strides = array<i32>} : memref<64x128xf32, #tpu.memory_space<vmem>>, vector<64x128xf32>,
    %c0_92 = arith.constant 0 : index
    %c0_93 = arith.constant 0 : index
    %69 = vector.load %arg14[%c0_92, %c0_93] : memref<64x128xf32, #tpu.memory_space<vmem>>, vector<64x128xf32>
    %c0_94 = arith.constant 0 : index
    %c0_95 = arith.constant 0 : index
    %70 = vector.load %arg6[%c0_94, %c0_95] : memref<1x128xf32, #tpu.memory_space<vmem>>, vector<1x128xf32>
    %71 = vector.broadcast %70 : vector<1x128xf32> to vector<64x128xf32>
    %72 = arith.mulf %69, %71 : vector<64x128xf32>
    %c0_96 = arith.constant 0 : index
    %c0_97 = arith.constant 0 : index
    %73 = vector.load %arg7[%c0_96, %c0_97] : memref<1x128xf32, #tpu.memory_space<vmem>>, vector<1x128xf32>
    %74 = vector.broadcast %73 : vector<1x128xf32> to vector<64x128xf32>
    %75 = arith.addf %72, %74 : vector<64x128xf32>
    %cst_98 = arith.constant 0.000000e+00 : f32
    %76 = vector.broadcast %cst_98 : f32 to vector<64x128xf32>
    %77 = arith.maximumf %75, %76 : vector<64x128xf32>
    %c0_99 = arith.constant 0 : index
    %c0_100 = arith.constant 0 : index
    %78 = vector.load %arg14[%c0_99, %c0_100] : memref<64x128xf32, #tpu.memory_space<vmem>>, vector<64x128xf32>
    tpu.vector_store %arg14[%c0_99, %c0_100], %77 {strides = array<i32>} : memref<64x128xf32, #tpu.memory_space<vmem>>, vector<64x128xf32>,
    %c0_101 = arith.constant 0 : index
    %c0_102 = arith.constant 0 : index
    %79 = tpu.strided_load %arg14[%c0_101, %c0_102] {strides = array<i32: 8, 1>} : memref<64x128xf32, #tpu.memory_space<vmem>>, vector<8x128xf32>
    %c1_103 = arith.constant 1 : index
    %c0_104 = arith.constant 0 : index
    %80 = tpu.strided_load %arg14[%c1_103, %c0_104] {strides = array<i32: 8, 1>} : memref<64x128xf32, #tpu.memory_space<vmem>>, vector<8x128xf32>
    %81 = arith.maximumf %79, %80 : vector<8x128xf32>
    %c112_i32 = arith.constant 112 : i32
    %82 = tpu.dynamic_rotate %81 by %c112_i32 dim 1 : vector<8x128xf32>, i32 -> vector<8x128xf32>
    %83 = arith.maximumf %81, %82 : vector<8x128xf32>
    %c0_105 = arith.constant 0 : index
    %c0_106 = arith.constant 0 : index
    %84 = vector.load %arg15[%c0_105, %c0_106] : memref<8x512xf32, #tpu.memory_space<vmem>>, vector<8x128xf32>
    tpu.vector_store %arg15[%c0_105, %c0_106], %83 {strides = array<i32>} : memref<8x512xf32, #tpu.memory_space<vmem>>, vector<8x128xf32>,
    %c2_107 = arith.constant 2 : index
    %c0_108 = arith.constant 0 : index
    %85 = tpu.strided_load %arg14[%c2_107, %c0_108] {strides = array<i32: 8, 1>} : memref<64x128xf32, #tpu.memory_space<vmem>>, vector<8x128xf32>
    %c3 = arith.constant 3 : index
    %c0_109 = arith.constant 0 : index
    %86 = tpu.strided_load %arg14[%c3, %c0_109] {strides = array<i32: 8, 1>} : memref<64x128xf32, #tpu.memory_space<vmem>>, vector<8x128xf32>
    %87 = arith.maximumf %85, %86 : vector<8x128xf32>
    %c112_i32_110 = arith.constant 112 : i32
    %88 = tpu.dynamic_rotate %87 by %c112_i32_110 dim 1 : vector<8x128xf32>, i32 -> vector<8x128xf32>
    %89 = arith.maximumf %87, %88 : vector<8x128xf32>
    %c0_111 = arith.constant 0 : index
    %c128 = arith.constant 128 : index
    %90 = vector.load %arg15[%c0_111, %c128] : memref<8x512xf32, #tpu.memory_space<vmem>>, vector<8x128xf32>
    tpu.vector_store %arg15[%c0_111, %c128], %89 {strides = array<i32>} : memref<8x512xf32, #tpu.memory_space<vmem>>, vector<8x128xf32>,
    %c4 = arith.constant 4 : index
    %c0_112 = arith.constant 0 : index
    %91 = tpu.strided_load %arg14[%c4, %c0_112] {strides = array<i32: 8, 1>} : memref<64x128xf32, #tpu.memory_space<vmem>>, vector<8x128xf32>
    %c5 = arith.constant 5 : index
    %c0_113 = arith.constant 0 : index
    %92 = tpu.strided_load %arg14[%c5, %c0_113] {strides = array<i32: 8, 1>} : memref<64x128xf32, #tpu.memory_space<vmem>>, vector<8x128xf32>
    %93 = arith.maximumf %91, %92 : vector<8x128xf32>
    %c112_i32_114 = arith.constant 112 : i32
    %94 = tpu.dynamic_rotate %93 by %c112_i32_114 dim 1 : vector<8x128xf32>, i32 -> vector<8x128xf32>
    %95 = arith.maximumf %93, %94 : vector<8x128xf32>
    %c0_115 = arith.constant 0 : index
    %c256 = arith.constant 256 : index
    %96 = vector.load %arg15[%c0_115, %c256] : memref<8x512xf32, #tpu.memory_space<vmem>>, vector<8x128xf32>
    tpu.vector_store %arg15[%c0_115, %c256], %95 {strides = array<i32>} : memref<8x512xf32, #tpu.memory_space<vmem>>, vector<8x128xf32>,
    %c6 = arith.constant 6 : index
    %c0_116 = arith.constant 0 : index
    %97 = tpu.strided_load %arg14[%c6, %c0_116] {strides = array<i32: 8, 1>} : memref<64x128xf32, #tpu.memory_space<vmem>>, vector<8x128xf32>
    %c7 = arith.constant 7 : index
    %c0_117 = arith.constant 0 : index
    %98 = tpu.strided_load %arg14[%c7, %c0_117] {strides = array<i32: 8, 1>} : memref<64x128xf32, #tpu.memory_space<vmem>>, vector<8x128xf32>
    %99 = arith.maximumf %97, %98 : vector<8x128xf32>
    %c112_i32_118 = arith.constant 112 : i32
    %100 = tpu.dynamic_rotate %99 by %c112_i32_118 dim 1 : vector<8x128xf32>, i32 -> vector<8x128xf32>
    %101 = arith.maximumf %99, %100 : vector<8x128xf32>
    %c0_119 = arith.constant 0 : index
    %c384 = arith.constant 384 : index
    %102 = vector.load %arg15[%c0_119, %c384] : memref<8x512xf32, #tpu.memory_space<vmem>>, vector<8x128xf32>
    tpu.vector_store %arg15[%c0_119, %c384], %101 {strides = array<i32>} : memref<8x512xf32, #tpu.memory_space<vmem>>, vector<8x128xf32>,
    %c0_120 = arith.constant 0 : index
    %c0_121 = arith.constant 0 : index
    %103 = vector.load %arg15[%c0_120, %c0_121] : memref<8x512xf32, #tpu.memory_space<vmem>>, vector<8x512xf32>
    %c0_122 = arith.constant 0 : index
    %c0_123 = arith.constant 0 : index
    %104 = vector.load %arg8[%c0_122, %c0_123] : memref<512x128xf32, #tpu.memory_space<vmem>>, vector<512x128xf32>
    %cst_124 = arith.constant dense<0.000000e+00> : vector<8x128xf32>
    %105 = tpu.matmul %103, %104, %cst_124 {dimension_numbers = #tpu.dot_dimension_numbers<[1], [0], [0], [1], [0, 0, 1, 1], [], []>} : vector<8x512xf32>, vector<512x128xf32>, vector<8x128xf32> -> vector<8x128xf32>
    %c0_125 = arith.constant 0 : index
    %c0_126 = arith.constant 0 : index
    %106 = vector.load %arg9[%c0_125, %c0_126] : memref<1x128xf32, #tpu.memory_space<vmem>>, vector<1x128xf32>
    %107 = vector.broadcast %106 : vector<1x128xf32> to vector<8x128xf32>
    %108 = arith.addf %105, %107 : vector<8x128xf32>
    %c0_127 = arith.constant 0 : index
    %c0_128 = arith.constant 0 : index
    %109 = vector.load %arg10[%c0_127, %c0_128] : memref<8x128xf32, #tpu.memory_space<vmem>>, vector<8x128xf32>
    tpu.vector_store %arg10[%c0_127, %c0_128], %108 {strides = array<i32>} : memref<8x128xf32, #tpu.memory_space<vmem>>, vector<8x128xf32>,
    return
  }
  func.func @transform_0(%arg0: i32) -> (i32, i32, i32) {
    %c0_i32 = arith.constant 0 : i32
    %c0_i32_0 = arith.constant 0 : i32
    %c0_i32_1 = arith.constant 0 : i32
    return %arg0, %c0_i32, %c0_i32_0 : i32, i32, i32
  }
  func.func @transform_1(%arg0: i32) -> (i32, i32, i32) {
    %c0_i32 = arith.constant 0 : i32
    %c0_i32_0 = arith.constant 0 : i32
    %c0_i32_1 = arith.constant 0 : i32
    %c0_i32_2 = arith.constant 0 : i32
    return %c0_i32, %c0_i32_0, %c0_i32_1 : i32, i32, i32
  }
  func.func @transform_2(%arg0: i32) -> (i32, i32) {
    %c0_i32 = arith.constant 0 : i32
    %c0_i32_0 = arith.constant 0 : i32
    %c0_i32_1 = arith.constant 0 : i32
    return %c0_i32, %c0_i32_0 : i32, i32
  }
  func.func @transform_3(%arg0: i32) -> (i32, i32) {
    %c0_i32 = arith.constant 0 : i32
    %c0_i32_0 = arith.constant 0 : i32
    %c0_i32_1 = arith.constant 0 : i32
    return %c0_i32, %c0_i32_0 : i32, i32
  }
  func.func @transform_4(%arg0: i32) -> (i32, i32, i32) {
    %c0_i32 = arith.constant 0 : i32
    %c0_i32_0 = arith.constant 0 : i32
    %c0_i32_1 = arith.constant 0 : i32
    %c0_i32_2 = arith.constant 0 : i32
    return %c0_i32, %c0_i32_0, %c0_i32_1 : i32, i32, i32
  }
  func.func @transform_5(%arg0: i32) -> (i32, i32) {
    %c0_i32 = arith.constant 0 : i32
    %c0_i32_0 = arith.constant 0 : i32
    %c0_i32_1 = arith.constant 0 : i32
    return %c0_i32, %c0_i32_0 : i32, i32
  }
  func.func @transform_6(%arg0: i32) -> (i32, i32) {
    %c0_i32 = arith.constant 0 : i32
    %c0_i32_0 = arith.constant 0 : i32
    %c0_i32_1 = arith.constant 0 : i32
    return %c0_i32, %c0_i32_0 : i32, i32
  }
  func.func @transform_7(%arg0: i32) -> (i32, i32) {
    %c0_i32 = arith.constant 0 : i32
    %c0_i32_0 = arith.constant 0 : i32
    %c0_i32_1 = arith.constant 0 : i32
    return %c0_i32, %c0_i32_0 : i32, i32
  }
  func.func @transform_8(%arg0: i32) -> (i32, i32) {
    %c0_i32 = arith.constant 0 : i32
    %c0_i32_0 = arith.constant 0 : i32
    %c0_i32_1 = arith.constant 0 : i32
    return %c0_i32, %c0_i32_0 : i32, i32
  }
  func.func @transform_9(%arg0: i32) -> (i32, i32) {
    %c0_i32 = arith.constant 0 : i32
    %c0_i32_0 = arith.constant 0 : i32
    return %arg0, %c0_i32 : i32, i32
  }
}

</mosaic_0001>

<llo_original>
// kernel: tpu_custom_call.1
$region0: #{tpu_custom_call.1}
  #allocation0 [shape = 'u32[]', space=smem, size = 0x4, offset = 0x4, fixed_abs, tag = 'smem constant byte address 0x4 - core index']
  #allocation1 [shape = 'u32[144,128]{1,0:T(1,128)}', space=vmem, size = 0x12000, scoped, tag = 'internal scratch']
  #allocation2 [shape = 'f32[8,18,128]{2,1,0:T(8,128)}', space=vmem, size = 0x18000, scoped, tag = 'scratch operand']
  #allocation3 [shape = 'f32[128,128]{1,0:T(8,128)}', space=vmem, size = 0x10000, scoped, tag = 'scratch operand']
  #allocation4 [shape = 'f32[8,10,128]{2,1,0:T(8,128)}', space=vmem, size = 0x10000, scoped, tag = 'scratch operand']
  #allocation5 [shape = 'f32[64,128]{1,0:T(8,128)}', space=vmem, size = 0x8000, scoped, tag = 'scratch operand']
  #allocation6 [shape = 'f32[8,512]{1,0:T(8,128)}', space=vmem, size = 0x4000, scoped, tag = 'scratch operand']
  %s0 = inlined_call_operand.hbm [shape: f32[16,16,128], index: 0, kind: input, shape index: {}]
  %s1 = inlined_call_operand.hbm [shape: f32[3,128,128], index: 1, kind: input, shape index: {}]
  %s2 = inlined_call_operand.vmem [shape: f32[1,128], index: 2, kind: input, shape index: {}]
  %s3 = inlined_call_operand.vmem [shape: f32[1,128], index: 3, kind: input, shape index: {}]
  %s4 = inlined_call_operand.hbm [shape: f32[3,128,128], index: 4, kind: input, shape index: {}]
  %s5 = inlined_call_operand.vmem [shape: f32[1,128], index: 5, kind: input, shape index: {}]
  %s6 = inlined_call_operand.vmem [shape: f32[1,128], index: 6, kind: input, shape index: {}]
  %s7 = inlined_call_operand.hbm [shape: f32[512,128], index: 7, kind: input, shape index: {}]
  %s8 = inlined_call_operand.vmem [shape: f32[1,128], index: 8, kind: input, shape index: {}]
  %s9 = inlined_call_operand.hbm [shape: f32[16,128], index: 9, kind: output, shape index: {}]
  %s10 = sld [smem:[#allocation0]]
  $region85: #{tpu_custom_call.1} parent=0
    _
  %s12 = ssub.s32 1, %s10
  %s13 = scalar_select 0, %s12, %s10
  $region1: #{tpu_custom_call.1} parent=0
    #allocation7 [shape = 'u8[131072]{0}', space=vmem, size = 0x20000, scoped, tag = 'input window, operand 0']
    #allocation8 [shape = 's32[2]{0}', space=sflag, size = 0x8, scoped, tag = 'scoped memory for tpu_custom_call.1']
    #allocation9 [shape = 's32[2]{0}', space=sflag, size = 0x8, scoped, tag = 'scoped memory for tpu_custom_call.1']
    #allocation10 [shape = 'u8[196608]{0}', space=vmem, size = 0x30000, scoped, tag = 'input window, operand 1, single buffered']
    #allocation11 [shape = 's32[1]{0}', space=sflag, size = 0x4, scoped, tag = 'scoped memory for tpu_custom_call.1']
    #allocation12 [shape = 'u8[196608]{0}', space=vmem, size = 0x30000, scoped, tag = 'input window, operand 4, single buffered']
    #allocation13 [shape = 'u8[262144]{0}', space=vmem, size = 0x40000, scoped, tag = 'input window, operand 7, single buffered']
    #allocation14 [shape = 's32[1]{0}', space=sflag, size = 0x4, scoped, tag = 'scoped memory for tpu_custom_call.1']
    #allocation15 [shape = 'u8[8192]{0}', space=vmem, size = 0x2000, scoped, tag = 'output window, operand 0']
    %14 = vsyncpa [#allocation8], 0
    %s15 = scalar_lea.sflag [#allocation8], 1
    %16 = vsyncpa %s15, 0
    %17 = vsyncpa [#allocation11], 0
    %18 = vsyncpa [#allocation14], 0
    %19 = vsyncpa [#allocation9], 0
    %s20 = scalar_lea.sflag [#allocation9], 1
    %21 = vsyncpa %s20, 0
    loop: start=0, step=1, limit=4
    $region2: #{tpu_custom_call.1} parent=1 // loop_pre_header
      _
    $region3: #{tpu_custom_call.1} parent=1 // loop_header
      %s23 = sphi 0, %s27
      %p24 = scmp.ge.s32.totalorder %s23, 4
      %s33 = sphi 0, %s35
      %s36 = sphi 0, %s33
      %s37 = sphi 0, %s36
      %s53 = sphi 0, %s37
      %s57 = sphi 0, %s57
      %s59 = sphi 0, %s57
      %s60 = sphi 0, %s59
      %s74 = sphi 0, %s60
      %s78 = sphi 0, %s78
      %s80 = sphi 0, %s78
      %s81 = sphi 0, %s80
      %s95 = sphi 0, %s81
      %s99 = sphi 0, %s99
      %s101 = sphi 0, %s99
      %s102 = sphi 0, %s101
      %s116 = sphi 0, %s102
      %s120 = sphi 0, %s120
      %s122 = sphi 0, %s120
      %s123 = sphi 0, %s122
      %s137 = sphi 0, %s123
      %s141 = sphi 0, %s141
      %s143 = sphi 0, %s141
      %s144 = sphi 0, %s143
      %s158 = sphi 0, %s144
      %s162 = sphi 0, %s162
      %s164 = sphi 0, %s162
      %s165 = sphi 0, %s164
      %s179 = sphi 0, %s165
      %s183 = sphi 0, %s183
      %s185 = sphi 0, %s183
      %s186 = sphi 0, %s185
      %s200 = sphi 0, %s186
      %s204 = sphi 0, %s204
      %s206 = sphi 0, %s204
      %s207 = sphi 0, %s206
      %s221 = sphi 0, %s207
      %s227 = sphi 0, %s229
      %s230 = sphi 0, %s227
      %s231 = sphi 0, %s230
      %s247 = sphi 0, %s231
    $region4: #{tpu_custom_call.1} parent=1 // loop_header_branch
      %26 = sbr.rel (%p24) target = $region8
    $region5: #{tpu_custom_call.1} parent=1 // loop_body
      %s28 = ssub.s32 %s23, 1
      %s29 = ssub.s32 %s23, 2
      %s30 = sadd.s32 %s23, 1
      %s31 = ssub.s32 %s23, %s30
      %p32 = scmp.eq.s32.totalorder %s31, 0
      %s34 = sadd.s32 %s33, 1
      %s35 = scalar_select %p32, %s33, %s34
      %p38 = pneg %p32
      %p39 = scmp.eq.s32.totalorder %s23, 1
      %p40 = por %p38, %p39
      %p41 = scmp.ne.s32.totalorder %s33, %s36
      %p42 = scmp.eq.s32.totalorder %s23, 0
      %p43 = por %p41, %p42
      %p44 = scmp.ne.s32.totalorder %s33, %s36
      %p45 = scmp.eq.s32.totalorder %s28, 1
      %p46 = por %p44, %p45
      %p47 = scmp.ne.s32.totalorder %s36, %s37
      %p48 = scmp.eq.s32.totalorder %s28, 0
      %p49 = por %p47, %p48
      %p50 = scmp.ne.s32.totalorder %s36, %s37
      %p51 = scmp.eq.s32.totalorder %s29, 1
      %p52 = por %p50, %p51
      %p54 = scmp.ne.s32.totalorder %s37, %s53
      %p55 = scmp.eq.s32.totalorder %s29, 0
      %p56 = por %p54, %p55
      %s58 = sadd.s32 %s57, 1
      %p61 = scmp.eq.s32.totalorder %s23, 1
      %p62 = scmp.ne.s32.totalorder %s57, %s59
      %p63 = scmp.eq.s32.totalorder %s23, 0
      %p64 = por %p62, %p63
      %p65 = scmp.ne.s32.totalorder %s57, %s59
      %p66 = scmp.eq.s32.totalorder %s28, 1
      %p67 = por %p65, %p66
      %p68 = scmp.ne.s32.totalorder %s59, %s60
      %p69 = scmp.eq.s32.totalorder %s28, 0
      %p70 = por %p68, %p69
      %p71 = scmp.ne.s32.totalorder %s59, %s60
      %p72 = scmp.eq.s32.totalorder %s29, 1
      %p73 = por %p71, %p72
      %p75 = scmp.ne.s32.totalorder %s60, %s74
      %p76 = scmp.eq.s32.totalorder %s29, 0
      %p77 = por %p75, %p76
      %s79 = sadd.s32 %s78, 1
      %p82 = scmp.eq.s32.totalorder %s23, 1
      %p83 = scmp.ne.s32.totalorder %s78, %s80
      %p84 = scmp.eq.s32.totalorder %s23, 0
      %p85 = por %p83, %p84
      %p86 = scmp.ne.s32.totalorder %s78, %s80
      %p87 = scmp.eq.s32.totalorder %s28, 1
      %p88 = por %p86, %p87
      %p89 = scmp.ne.s32.totalorder %s80, %s81
      %p90 = scmp.eq.s32.totalorder %s28, 0
      %p91 = por %p89, %p90
      %p92 = scmp.ne.s32.totalorder %s80, %s81
      %p93 = scmp.eq.s32.totalorder %s29, 1
      %p94 = por %p92, %p93
      %p96 = scmp.ne.s32.totalorder %s81, %s95
      %p97 = scmp.eq.s32.totalorder %s29, 0
      %p98 = por %p96, %p97
      %s100 = sadd.s32 %s99, 1
      %p103 = scmp.eq.s32.totalorder %s23, 1
      %p104 = scmp.ne.s32.totalorder %s99, %s101
      %p105 = scmp.eq.s32.totalorder %s23, 0
      %p106 = por %p104, %p105
      %p107 = scmp.ne.s32.totalorder %s99, %s101
      %p108 = scmp.eq.s32.totalorder %s28, 1
      %p109 = por %p107, %p108
      %p110 = scmp.ne.s32.totalorder %s101, %s102
      %p111 = scmp.eq.s32.totalorder %s28, 0
      %p112 = por %p110, %p111
      %p113 = scmp.ne.s32.totalorder %s101, %s102
      %p114 = scmp.eq.s32.totalorder %s29, 1
      %p115 = por %p113, %p114
      %p117 = scmp.ne.s32.totalorder %s102, %s116
      %p118 = scmp.eq.s32.totalorder %s29, 0
      %p119 = por %p117, %p118
      %s121 = sadd.s32 %s120, 1
      %p124 = scmp.eq.s32.totalorder %s23, 1
      %p125 = scmp.ne.s32.totalorder %s120, %s122
      %p126 = scmp.eq.s32.totalorder %s23, 0
      %p127 = por %p125, %p126
      %p128 = scmp.ne.s32.totalorder %s120, %s122
      %p129 = scmp.eq.s32.totalorder %s28, 1
      %p130 = por %p128, %p129
      %p131 = scmp.ne.s32.totalorder %s122, %s123
      %p132 = scmp.eq.s32.totalorder %s28, 0
      %p133 = por %p131, %p132
      %p134 = scmp.ne.s32.totalorder %s122, %s123
      %p135 = scmp.eq.s32.totalorder %s29, 1
      %p136 = por %p134, %p135
      %p138 = scmp.ne.s32.totalorder %s123, %s137
      %p139 = scmp.eq.s32.totalorder %s29, 0
      %p140 = por %p138, %p139
      %s142 = sadd.s32 %s141, 1
      %p145 = scmp.eq.s32.totalorder %s23, 1
      %p146 = scmp.ne.s32.totalorder %s141, %s143
      %p147 = scmp.eq.s32.totalorder %s23, 0
      %p148 = por %p146, %p147
      %p149 = scmp.ne.s32.totalorder %s141, %s143
      %p150 = scmp.eq.s32.totalorder %s28, 1
      %p151 = por %p149, %p150
      %p152 = scmp.ne.s32.totalorder %s143, %s144
      %p153 = scmp.eq.s32.totalorder %s28, 0
      %p154 = por %p152, %p153
      %p155 = scmp.ne.s32.totalorder %s143, %s144
      %p156 = scmp.eq.s32.totalorder %s29, 1
      %p157 = por %p155, %p156
      %p159 = scmp.ne.s32.totalorder %s144, %s158
      %p160 = scmp.eq.s32.totalorder %s29, 0
      %p161 = por %p159, %p160
      %s163 = sadd.s32 %s162, 1
      %p166 = scmp.eq.s32.totalorder %s23, 1
      %p167 = scmp.ne.s32.totalorder %s162, %s164
      %p168 = scmp.eq.s32.totalorder %s23, 0
      %p169 = por %p167, %p168
      %p170 = scmp.ne.s32.totalorder %s162, %s164
      %p171 = scmp.eq.s32.totalorder %s28, 1
      %p172 = por %p170, %p171
      %p173 = scmp.ne.s32.totalorder %s164, %s165
      %p174 = scmp.eq.s32.totalorder %s28, 0
      %p175 = por %p173, %p174
      %p176 = scmp.ne.s32.totalorder %s164, %s165
      %p177 = scmp.eq.s32.totalorder %s29, 1
      %p178 = por %p176, %p177
      %p180 = scmp.ne.s32.totalorder %s165, %s179
      %p181 = scmp.eq.s32.totalorder %s29, 0
      %p182 = por %p180, %p181
      %s184 = sadd.s32 %s183, 1
      %p187 = scmp.eq.s32.totalorder %s23, 1
      %p188 = scmp.ne.s32.totalorder %s183, %s185
      %p189 = scmp.eq.s32.totalorder %s23, 0
      %p190 = por %p188, %p189
      %p191 = scmp.ne.s32.totalorder %s183, %s185
      %p192 = scmp.eq.s32.totalorder %s28, 1
      %p193 = por %p191, %p192
      %p194 = scmp.ne.s32.totalorder %s185, %s186
      %p195 = scmp.eq.s32.totalorder %s28, 0
      %p196 = por %p194, %p195
      %p197 = scmp.ne.s32.totalorder %s185, %s186
      %p198 = scmp.eq.s32.totalorder %s29, 1
      %p199 = por %p197, %p198
      %p201 = scmp.ne.s32.totalorder %s186, %s200
      %p202 = scmp.eq.s32.totalorder %s29, 0
      %p203 = por %p201, %p202
      %s205 = sadd.s32 %s204, 1
      %p208 = scmp.eq.s32.totalorder %s23, 1
      %p209 = scmp.ne.s32.totalorder %s204, %s206
      %p210 = scmp.eq.s32.totalorder %s23, 0
      %p211 = por %p209, %p210
      %p212 = scmp.ne.s32.totalorder %s204, %s206
      %p213 = scmp.eq.s32.totalorder %s28, 1
      %p214 = por %p212, %p213
      %p215 = scmp.ne.s32.totalorder %s206, %s207
      %p216 = scmp.eq.s32.totalorder %s28, 0
      %p217 = por %p215, %p216
      %p218 = scmp.ne.s32.totalorder %s206, %s207
      %p219 = scmp.eq.s32.totalorder %s29, 1
      %p220 = por %p218, %p219
      %p222 = scmp.ne.s32.totalorder %s207, %s221
      %p223 = scmp.eq.s32.totalorder %s29, 0
      %p224 = por %p222, %p223
      %s225 = ssub.s32 %s23, %s30
      %p226 = scmp.eq.s32.totalorder %s225, 0
      %s228 = sadd.s32 %s227, 1
      %s229 = scalar_select %p226, %s227, %s228
      %p232 = pneg %p226
      %p233 = scmp.eq.s32.totalorder %s23, 1
      %p234 = por %p232, %p233
      %p235 = scmp.ne.s32.totalorder %s227, %s230
      %p236 = scmp.eq.s32.totalorder %s23, 0
      %p237 = por %p235, %p236
      %p238 = scmp.ne.s32.totalorder %s227, %s230
      %p239 = scmp.eq.s32.totalorder %s28, 1
      %p240 = por %p238, %p239
      %p241 = scmp.ne.s32.totalorder %s230, %s231
      %p242 = scmp.eq.s32.totalorder %s28, 0
      %p243 = por %p241, %p242
      %p244 = scmp.ne.s32.totalorder %s230, %s231
      %p245 = scmp.eq.s32.totalorder %s29, 1
      %p246 = por %p244, %p245
      %p248 = scmp.ne.s32.totalorder %s231, %s247
      %p249 = scmp.eq.s32.totalorder %s29, 0
      %p250 = por %p248, %p249
      %p251 = scmp.le.s32.totalorder 1, %s23
      %p252 = scmp.lt.s32.totalorder %s23, 3
      %p253 = pnand %p251, %p252
      %p254 = pneg %p253
      // Predicated region
      $region9: #{tpu_custom_call.1} parent=5 // pred_check
        _
      $region10: #{tpu_custom_call.1} parent=5 // pred_check_branch
        %256 = sbr.rel (%p253) target = $region12
      $region11: #{tpu_custom_call.1} parent=5 // pred_region
        %s257 = ssub.s32 %s23, 1
        // Predicated region
        $region13: #{tpu_custom_call.1} parent=11 // pred_check
          %p258 = pneg %p70
        $region14: #{tpu_custom_call.1} parent=11 // pred_check_branch
          %260 = sbr.rel (%p258) target = $region16
        $region15: #{tpu_custom_call.1} parent=11 // pred_region
          %s262 = ssub.s32 6144, 6144
          %263 = vsyncadd [#allocation11], %s262
          %s264 = sshll.u32 [#allocation10], 4
          %s265 = int_to_ptr.vmem [resolvable:$true] %s264
          %270 = dma.hbm_to_vmem [thread:$0]  %s1, 6144, %s265, [#allocation11], 128, 128, 8
        $region16: #{tpu_custom_call.1} parent=11 // pred_fallthru
          _
        // Predicated region
        $region17: #{tpu_custom_call.1} parent=11 // pred_check
          %p271 = pneg %p91
        $region18: #{tpu_custom_call.1} parent=11 // pred_check_branch
          %273 = sbr.rel (%p271) target = $region20
        $region19: #{tpu_custom_call.1} parent=11 // pred_region
          _
        $region20: #{tpu_custom_call.1} parent=11 // pred_fallthru
          _
        // Predicated region
        $region21: #{tpu_custom_call.1} parent=11 // pred_check
          %p274 = pneg %p112
        $region22: #{tpu_custom_call.1} parent=11 // pred_check_branch
          %276 = sbr.rel (%p274) target = $region24
        $region23: #{tpu_custom_call.1} parent=11 // pred_region
          _
        $region24: #{tpu_custom_call.1} parent=11 // pred_fallthru
          _
        // Predicated region
        $region25: #{tpu_custom_call.1} parent=11 // pred_check
          %p277 = pneg %p133
        $region26: #{tpu_custom_call.1} parent=11 // pred_check_branch
          %279 = sbr.rel (%p277) target = $region28
        $region27: #{tpu_custom_call.1} parent=11 // pred_region
          %s281 = ssub.s32 6144, 6144
          %282 = vsyncadd [#allocation11], %s281
          %s283 = sshll.u32 [#allocation12], 4
          %s284 = int_to_ptr.vmem [resolvable:$true] %s283
          %289 = dma.hbm_to_vmem [thread:$0]  %s4, 6144, %s284, [#allocation11], 128, 128, 8
        $region28: #{tpu_custom_call.1} parent=11 // pred_fallthru
          _
        // Predicated region
        $region29: #{tpu_custom_call.1} parent=11 // pred_check
          %p290 = pneg %p154
        $region30: #{tpu_custom_call.1} parent=11 // pred_check_branch
          %292 = sbr.rel (%p290) target = $region32
        $region31: #{tpu_custom_call.1} parent=11 // pred_region
          _
        $region32: #{tpu_custom_call.1} parent=11 // pred_fallthru
          _
        // Predicated region
        $region33: #{tpu_custom_call.1} parent=11 // pred_check
          %p293 = pneg %p175
        $region34: #{tpu_custom_call.1} parent=11 // pred_check_branch
          %295 = sbr.rel (%p293) target = $region36
        $region35: #{tpu_custom_call.1} parent=11 // pred_region
          _
        $region36: #{tpu_custom_call.1} parent=11 // pred_fallthru
          _
        // Predicated region
        $region37: #{tpu_custom_call.1} parent=11 // pred_check
          %p296 = pneg %p196
        $region38: #{tpu_custom_call.1} parent=11 // pred_check_branch
          %298 = sbr.rel (%p296) target = $region40
        $region39: #{tpu_custom_call.1} parent=11 // pred_region
          %s300 = ssub.s32 8192, 8192
          %301 = vsyncadd [#allocation14], %s300
          %s302 = sshll.u32 [#allocation13], 4
          %s303 = int_to_ptr.vmem [resolvable:$true] %s302
          %308 = dma.hbm_to_vmem [thread:$0]  %s7, 8192, %s303, [#allocation14], 128, 128, 8
        $region40: #{tpu_custom_call.1} parent=11 // pred_fallthru
          _
        // Predicated region
        $region41: #{tpu_custom_call.1} parent=11 // pred_check
          %p309 = pneg %p217
        $region42: #{tpu_custom_call.1} parent=11 // pred_check_branch
          %311 = sbr.rel (%p309) target = $region44
        $region43: #{tpu_custom_call.1} parent=11 // pred_region
          _
        $region44: #{tpu_custom_call.1} parent=11 // pred_fallthru
          _
      $region12: #{tpu_custom_call.1} parent=5 // pred_fallthru
        _
      %p312 = scmp.lt.s32.totalorder %s23, 2
      // Predicated region
      $region45: #{tpu_custom_call.1} parent=5 // pred_check
        %p313 = pneg %p312
      $region46: #{tpu_custom_call.1} parent=5 // pred_check_branch
        %315 = sbr.rel (%p313) target = $region48
      $region47: #{tpu_custom_call.1} parent=5 // pred_region
        // Predicated region
        $region49: #{tpu_custom_call.1} parent=47 // pred_check
          %p316 = pneg %p43
        $region50: #{tpu_custom_call.1} parent=47 // pred_check_branch
          %318 = sbr.rel (%p316) target = $region52
        $region51: #{tpu_custom_call.1} parent=47 // pred_region
          %s319 = sand.u32 %s33, 1
          %s320 = scalar_lea.sflag [#allocation8], %s319
          %s321 = sand.u32 %s33, 1
          %s322 = smul.addr %s321, 128
          %s323 = scalar_lea.vmem [#allocation7], %s322
          %s324 = smul.u32 8, %s23
          %s326 = ssub.s32 2048, 2048
          %327 = vsyncadd %s320, %s326
          %s328 = smul.addr %s324, 2
          %s329 = smul.addr %s328, 128
          %s330 = scalar_lea.hbm %s0, %s329
          %s331 = sshll.u32 %s323, 4
          %s332 = int_to_ptr.vmem [resolvable:$true] %s331
          %337 = dma.hbm_to_vmem [thread:$0]  %s330, 2048, %s332, %s320, 128, 128, 8
        $region52: #{tpu_custom_call.1} parent=47 // pred_fallthru
          _
      $region48: #{tpu_custom_call.1} parent=5 // pred_fallthru
        _
      %p338 = scmp.le.s32.totalorder 1, %s23
      %p339 = scmp.lt.s32.totalorder %s23, 3
      %p340 = pnand %p338, %p339
      %p341 = pneg %p340
      // Predicated region
      $region53: #{tpu_custom_call.1} parent=5 // pred_check
        _
      $region54: #{tpu_custom_call.1} parent=5 // pred_check_branch
        %343 = sbr.rel (%p340) target = $region56
      $region55: #{tpu_custom_call.1} parent=5 // pred_region
        %s344 = ssub.s32 %s23, 1
        %s345 = sand.u32 %s36, 1
        %s346 = scalar_lea.sflag [#allocation8], %s345
        %s347 = sand.u32 %s36, 1
        %s348 = smul.addr %s347, 128
        %s349 = scalar_lea.vmem [#allocation7], %s348
        // Predicated region
        $region57: #{tpu_custom_call.1} parent=55 // pred_check
          %p350 = pneg %p49
        $region58: #{tpu_custom_call.1} parent=55 // pred_check_branch
          %352 = sbr.rel (%p350) target = $region60
        $region59: #{tpu_custom_call.1} parent=55 // pred_region
          %353 = dma.done %s346, 2048
        $region60: #{tpu_custom_call.1} parent=55 // pred_fallthru
          _
        // Predicated region
        $region61: #{tpu_custom_call.1} parent=55 // pred_check
          %p354 = pneg %p70
        $region62: #{tpu_custom_call.1} parent=55 // pred_check_branch
          %356 = sbr.rel (%p354) target = $region64
        $region63: #{tpu_custom_call.1} parent=55 // pred_region
          %357 = dma.done [#allocation11], 6144
        $region64: #{tpu_custom_call.1} parent=55 // pred_fallthru
          _
        // Predicated region
        $region65: #{tpu_custom_call.1} parent=55 // pred_check
          %p358 = pneg %p133
        $region66: #{tpu_custom_call.1} parent=55 // pred_check_branch
          %360 = sbr.rel (%p358) target = $region68
        $region67: #{tpu_custom_call.1} parent=55 // pred_region
          %361 = dma.done [#allocation11], 6144
        $region68: #{tpu_custom_call.1} parent=55 // pred_fallthru
          _
        // Predicated region
        $region69: #{tpu_custom_call.1} parent=55 // pred_check
          %p362 = pneg %p196
        $region70: #{tpu_custom_call.1} parent=55 // pred_check_branch
          %364 = sbr.rel (%p362) target = $region72
        $region71: #{tpu_custom_call.1} parent=55 // pred_region
          %365 = dma.done [#allocation14], 8192
        $region72: #{tpu_custom_call.1} parent=55 // pred_fallthru
          _
        %s366 = sand.u32 %s36, 1
        %s367 = scalar_lea.sflag [#allocation8], %s366
        %s368 = sand.u32 %s36, 1
        %s369 = smul.addr %s368, 128
        %s370 = scalar_lea.vmem [#allocation7], %s369
        %p371 = pneg %p49
        %p372 = pneg %p46
        %p373 = pneg %p70
        %p374 = pneg %p67
        %p375 = pneg %p91
        %p376 = pneg %p88
        %p377 = pneg %p112
        %p378 = pneg %p109
        %p379 = pneg %p133
        %p380 = pneg %p130
        %p381 = pneg %p154
        %p382 = pneg %p151
        %p383 = pneg %p175
        %p384 = pneg %p172
        %p385 = pneg %p196
        %p386 = pneg %p193
        %p387 = pneg %p217
        %p388 = pneg %p214
        %p389 = pneg %p243
        %p390 = pneg %p240
        %s391 = sand.u32 %s230, 1
        %s392 = scalar_lea.sflag [#allocation9], %s391
        %s393 = sand.u32 %s230, 1
        %s394 = smul.addr %s393, 8
        %s395 = scalar_lea.vmem [#allocation15], %s394
        %s396 = smul.u32 8, %s28
        %397 = vst [vmem:[#allocation2] sm:$0x1] 0.0
        %398 = vst [vmem:[#allocation2 + $0x18] sm:$0x1] 0.0
        %399 = vst [vmem:[#allocation2 + $0x30] sm:$0x1] 0.0
        %400 = vst [vmem:[#allocation2 + $0x48] sm:$0x1] 0.0
        %401 = vst [vmem:[#allocation2 + $0x60] sm:$0x1] 0.0
        %402 = vst [vmem:[#allocation2 + $0x78] sm:$0x1] 0.0
        %403 = vst [vmem:[#allocation2 + $0x90] sm:$0x1] 0.0
        %404 = vst [vmem:[#allocation2 + $0xa8] sm:$0x1] 0.0
        %405 = vst [vmem:[#allocation2 + $0x11] sm:$0x1] 0.0
        %406 = vst [vmem:[#allocation2 + $0x29] sm:$0x1] 0.0
        %407 = vst [vmem:[#allocation2 + $0x41] sm:$0x1] 0.0
        %408 = vst [vmem:[#allocation2 + $0x59] sm:$0x1] 0.0
        %409 = vst [vmem:[#allocation2 + $0x71] sm:$0x1] 0.0
        %410 = vst [vmem:[#allocation2 + $0x89] sm:$0x1] 0.0
        %411 = vst [vmem:[#allocation2 + $0xa1] sm:$0x1] 0.0
        %412 = vst [vmem:[#allocation2 + $0xb9] sm:$0x1] 0.0
        %v413 = vld [vmem:[%s349] sm:$0xff]
        %v414 = vld [vmem:[%s349 + $0x8] sm:$0xff]
        %v415 = vld [vmem:[%s349 + $0x10] sm:$0xff]
        %v416 = vld [vmem:[%s349 + $0x18] sm:$0xff]
        %v417 = vld [vmem:[%s349 + $0x20] sm:$0xff]
        %v418 = vld [vmem:[%s349 + $0x28] sm:$0xff]
        %v419 = vld [vmem:[%s349 + $0x30] sm:$0xff]
        %v420 = vld [vmem:[%s349 + $0x38] sm:$0xff]
        %v421 = vld [vmem:[%s349 + $0x40] sm:$0xff]
        %v422 = vld [vmem:[%s349 + $0x48] sm:$0xff]
        %v423 = vld [vmem:[%s349 + $0x50] sm:$0xff]
        %v424 = vld [vmem:[%s349 + $0x58] sm:$0xff]
        %v425 = vld [vmem:[%s349 + $0x60] sm:$0xff]
        %v426 = vld [vmem:[%s349 + $0x68] sm:$0xff]
        %v427 = vld [vmem:[%s349 + $0x70] sm:$0xff]
        %v428 = vld [vmem:[%s349 + $0x78] sm:$0xff]
        %429 = vst [vmem:[#allocation2 + $0x1] sm:$0xff] %v413
        %430 = vst [vmem:[#allocation2 + $0x9] sm:$0xff] %v414
        %431 = vst [vmem:[#allocation2 + $0x19] sm:$0xff] %v415
        %432 = vst [vmem:[#allocation2 + $0x21] sm:$0xff] %v416
        %433 = vst [vmem:[#allocation2 + $0x31] sm:$0xff] %v417
        %434 = vst [vmem:[#allocation2 + $0x39] sm:$0xff] %v418
        %435 = vst [vmem:[#allocation2 + $0x49] sm:$0xff] %v419
        %436 = vst [vmem:[#allocation2 + $0x51] sm:$0xff] %v420
        %437 = vst [vmem:[#allocation2 + $0x61] sm:$0xff] %v421
        %438 = vst [vmem:[#allocation2 + $0x69] sm:$0xff] %v422
        %439 = vst [vmem:[#allocation2 + $0x79] sm:$0xff] %v423
        %440 = vst [vmem:[#allocation2 + $0x81] sm:$0xff] %v424
        %441 = vst [vmem:[#allocation2 + $0x91] sm:$0xff] %v425
        %442 = vst [vmem:[#allocation2 + $0x99] sm:$0xff] %v426
        %443 = vst [vmem:[#allocation2 + $0xa9] sm:$0xff] %v427
        %444 = vst [vmem:[#allocation2 + $0xb1] sm:$0xff] %v428
        %v445 = vld [vmem:[#allocation2] sm:$0xff]
        %v446 = vld [vmem:[#allocation2 + $0x8] sm:$0xff]
        %v447 = vld [vmem:[#allocation2 + $0x18] sm:$0xff]
        %v448 = vld [vmem:[#allocation2 + $0x20] sm:$0xff]
        %v449 = vld [vmem:[#allocation2 + $0x30] sm:$0xff]
        %v450 = vld [vmem:[#allocation2 + $0x38] sm:$0xff]
        %v451 = vld [vmem:[#allocation2 + $0x48] sm:$0xff]
        %v452 = vld [vmem:[#allocation2 + $0x50] sm:$0xff]
        %v453 = vld [vmem:[#allocation2 + $0x60] sm:$0xff]
        %v454 = vld [vmem:[#allocation2 + $0x68] sm:$0xff]
        %v455 = vld [vmem:[#allocation2 + $0x78] sm:$0xff]
        %v456 = vld [vmem:[#allocation2 + $0x80] sm:$0xff]
        %v457 = vld [vmem:[#allocation2 + $0x90] sm:$0xff]
        %v458 = vld [vmem:[#allocation2 + $0x98] sm:$0xff]
        %v459 = vld [vmem:[#allocation2 + $0xa8] sm:$0xff]
        %v460 = vld [vmem:[#allocation2 + $0xb0] sm:$0xff]
        %v461 = vld [vmem:[#allocation10] sm:$0xff]
        %v462 = vld [vmem:[#allocation10 + $0x8] sm:$0xff]
        %v463 = vld [vmem:[#allocation10 + $0x10] sm:$0xff]
        %v464 = vld [vmem:[#allocation10 + $0x18] sm:$0xff]
        %v465 = vld [vmem:[#allocation10 + $0x20] sm:$0xff]
        %v466 = vld [vmem:[#allocation10 + $0x28] sm:$0xff]
        %v467 = vld [vmem:[#allocation10 + $0x30] sm:$0xff]
        %v468 = vld [vmem:[#allocation10 + $0x38] sm:$0xff]
        %v469 = vld [vmem:[#allocation10 + $0x40] sm:$0xff]
        %v470 = vld [vmem:[#allocation10 + $0x48] sm:$0xff]
        %v471 = vld [vmem:[#allocation10 + $0x50] sm:$0xff]
        %v472 = vld [vmem:[#allocation10 + $0x58] sm:$0xff]
        %v473 = vld [vmem:[#allocation10 + $0x60] sm:$0xff]
        %v474 = vld [vmem:[#allocation10 + $0x68] sm:$0xff]
        %v475 = vld [vmem:[#allocation10 + $0x70] sm:$0xff]
        %v476 = vld [vmem:[#allocation10 + $0x78] sm:$0xff]
        %477 = vmatprep.subr.mxu0 0.0
        %478 = vmatpush1.msra.mxu0 %v461
        %479 = vmatprep.subr.mxu0 0.0
        %480 = vmatpush1.msra.mxu0 %v462
        %481 = vmatprep.subr.mxu0 0.0
        %482 = vmatpush1.msra.mxu0 %v463
        %483 = vmatprep.subr.mxu0 0.0
        %484 = vmatpush1.msra.mxu0 %v464
        %485 = vmatprep.subr.mxu0 0.0
        %486 = vmatpush1.msra.mxu0 %v465
        %487 = vmatprep.subr.mxu0 0.0
        %488 = vmatpush1.msra.mxu0 %v466
        %489 = vmatprep.subr.mxu0 0.0
        %490 = vmatpush1.msra.mxu0 %v467
        %491 = vmatprep.subr.mxu0 0.0
        %492 = vmatpush1.msra.mxu0 %v468
        %493 = vmatprep.subr.mxu0 0.0
        %494 = vmatpush1.msra.mxu0 %v469
        %495 = vmatprep.subr.mxu0 0.0
        %496 = vmatpush1.msra.mxu0 %v470
        %497 = vmatprep.subr.mxu0 0.0
        %498 = vmatpush1.msra.mxu0 %v471
        %499 = vmatprep.subr.mxu0 0.0
        %500 = vmatpush1.msra.mxu0 %v472
        %501 = vmatprep.subr.mxu0 0.0
        %502 = vmatpush1.msra.mxu0 %v473
        %503 = vmatprep.subr.mxu0 0.0
        %504 = vmatpush1.msra.mxu0 %v474
        %505 = vmatprep.subr.mxu0 0.0
        %506 = vmatpush1.msra.mxu0 %v475
        %507 = vmatprep.subr.mxu0 0.0
        %508 = vmatpush1.msra.mxu0 %v476
        %509 = vmatprep.subr.mxu0 0.0
        %510 = vmatpush1.msra.mxu0 0.0
        %511 = vmatprep.subr.mxu0 0.0
        %512 = vmatpush1.msra.mxu0 0.0
        %513 = vmatprep.subr.mxu0 0.0
        %514 = vmatpush1.msra.mxu0 0.0
        %515 = vmatprep.subr.mxu0 0.0
        %516 = vmatpush1.msra.mxu0 0.0
        %517 = vmatprep.subr.mxu0 0.0
        %518 = vmatpush1.msra.mxu0 0.0
        %519 = vmatprep.subr.mxu0 0.0
        %520 = vmatpush1.msra.mxu0 0.0
        %521 = vmatprep.subr.mxu0 0.0
        %522 = vmatpush1.msra.mxu0 0.0
        %523 = vmatprep.subr.mxu0 0.0
        %524 = vmatpush1.msra.mxu0 0.0
        %525 = vmatprep.subr.mxu0 0.0
        %526 = vmatpush1.msra.mxu0 0.0
        %527 = vmatprep.subr.mxu0 0.0
        %528 = vmatpush1.msra.mxu0 0.0
        %529 = vmatprep.subr.mxu0 0.0
        %530 = vmatpush1.msra.mxu0 0.0
        %531 = vmatprep.subr.mxu0 0.0
        %532 = vmatpush1.msra.mxu0 0.0
        %533 = vmatprep.subr.mxu0 0.0
        %534 = vmatpush1.msra.mxu0 0.0
        %535 = vmatprep.subr.mxu0 0.0
        %536 = vmatpush1.msra.mxu0 0.0
        %537 = vmatprep.subr.mxu0 0.0
        %538 = vmatpush1.msra.mxu0 0.0
        %539 = vmatprep.subr.mxu0 0.0
        %540 = vmatpush1.msra.mxu0 0.0
        %541 = vmatprep.mubr.f32.mxu0 0.0
        %542 = vmatmul.mubr.f32.gmra.mrb[0].mxu0 %v445
        %v543 = vpop.f32.mrb[0].mxu0
        %v544 = vadd.f32 0.0, %v543
        %v545 = vpop.f32.mrb[0].mxu0
        %546 = vmatprep.mubr.f32.mxu0 0.0
        %547 = vmatmul.mubr.f32.gmra.mrb[0].mxu0 %v446
        %v548 = vpop.f32.mrb[0].mxu0
        %v549 = vadd.f32 0.0, %v548
        %v550 = vpop.f32.mrb[0].mxu0
        %551 = vmatprep.mubr.f32.mxu0 0.0
        %552 = vmatmul.mubr.f32.gmra.mrb[0].mxu0 %v447
        %v553 = vpop.f32.mrb[0].mxu0
        %v554 = vadd.f32 0.0, %v553
        %v555 = vpop.f32.mrb[0].mxu0
        %556 = vmatprep.mubr.f32.mxu0 0.0
        %557 = vmatmul.mubr.f32.gmra.mrb[0].mxu0 %v448
        %v558 = vpop.f32.mrb[0].mxu0
        %v559 = vadd.f32 0.0, %v558
        %v560 = vpop.f32.mrb[0].mxu0
        %561 = vmatprep.mubr.f32.mxu0 0.0
        %562 = vmatmul.mubr.f32.gmra.mrb[0].mxu0 %v449
        %v563 = vpop.f32.mrb[0].mxu0
        %v564 = vadd.f32 0.0, %v563
        %v565 = vpop.f32.mrb[0].mxu0
        %566 = vmatprep.mubr.f32.mxu0 0.0
        %567 = vmatmul.mubr.f32.gmra.mrb[0].mxu0 %v450
        %v568 = vpop.f32.mrb[0].mxu0
        %v569 = vadd.f32 0.0, %v568
        %v570 = vpop.f32.mrb[0].mxu0
        %571 = vmatprep.mubr.f32.mxu0 0.0
        %572 = vmatmul.mubr.f32.gmra.mrb[0].mxu0 %v451
        %v573 = vpop.f32.mrb[0].mxu0
        %v574 = vadd.f32 0.0, %v573
        %v575 = vpop.f32.mrb[0].mxu0
        %576 = vmatprep.mubr.f32.mxu0 0.0
        %577 = vmatmul.mubr.f32.gmra.mrb[0].mxu0 %v452
        %v578 = vpop.f32.mrb[0].mxu0
        %v579 = vadd.f32 0.0, %v578
        %v580 = vpop.f32.mrb[0].mxu0
        %581 = vmatprep.mubr.f32.mxu0 0.0
        %582 = vmatmul.mubr.f32.gmra.mrb[0].mxu0 %v453
        %v583 = vpop.f32.mrb[0].mxu0
        %v584 = vadd.f32 0.0, %v583
        %v585 = vpop.f32.mrb[0].mxu0
        %586 = vmatprep.mubr.f32.mxu0 0.0
        %587 = vmatmul.mubr.f32.gmra.mrb[0].mxu0 %v454
        %v588 = vpop.f32.mrb[0].mxu0
        %v589 = vadd.f32 0.0, %v588
        %v590 = vpop.f32.mrb[0].mxu0
        %591 = vmatprep.mubr.f32.mxu0 0.0
        %592 = vmatmul.mubr.f32.gmra.mrb[0].mxu0 %v455
        %v593 = vpop.f32.mrb[0].mxu0
        %v594 = vadd.f32 0.0, %v593
        %v595 = vpop.f32.mrb[0].mxu0
        %596 = vmatprep.mubr.f32.mxu0 0.0
        %597 = vmatmul.mubr.f32.gmra.mrb[0].mxu0 %v456
        %v598 = vpop.f32.mrb[0].mxu0
        %v599 = vadd.f32 0.0, %v598
        %v600 = vpop.f32.mrb[0].mxu0
        %601 = vmatprep.mubr.f32.mxu0 0.0
        %602 = vmatmul.mubr.f32.gmra.mrb[0].mxu0 %v457
        %v603 = vpop.f32.mrb[0].mxu0
        %v604 = vadd.f32 0.0, %v603
        %v605 = vpop.f32.mrb[0].mxu0
        %606 = vmatprep.mubr.f32.mxu0 0.0
        %607 = vmatmul.mubr.f32.gmra.mrb[0].mxu0 %v458
        %v608 = vpop.f32.mrb[0].mxu0
        %v609 = vadd.f32 0.0, %v608
        %v610 = vpop.f32.mrb[0].mxu0
        %611 = vmatprep.mubr.f32.mxu0 0.0
        %612 = vmatmul.mubr.f32.gmra.mrb[0].mxu0 %v459
        %v613 = vpop.f32.mrb[0].mxu0
        %v614 = vadd.f32 0.0, %v613
        %v615 = vpop.f32.mrb[0].mxu0
        %616 = vmatprep.mubr.f32.mxu0 0.0
        %617 = vmatmul.mubr.f32.gmra.mrb[0].mxu0 %v460
        %v618 = vpop.f32.mrb[0].mxu0
        %v619 = vadd.f32 0.0, %v618
        %v620 = vpop.f32.mrb[0].mxu0
        %621 = vdwg.mxu0
        %622 = vst [vmem:[#allocation3] sm:$0xff] %v544
        %623 = vst [vmem:[#allocation3 + $0x8] sm:$0xff] %v549
        %624 = vst [vmem:[#allocation3 + $0x10] sm:$0xff] %v554
        %625 = vst [vmem:[#allocation3 + $0x18] sm:$0xff] %v559
        %626 = vst [vmem:[#allocation3 + $0x20] sm:$0xff] %v564
        %627 = vst [vmem:[#allocation3 + $0x28] sm:$0xff] %v569
        %628 = vst [vmem:[#allocation3 + $0x30] sm:$0xff] %v574
        %629 = vst [vmem:[#allocation3 + $0x38] sm:$0xff] %v579
        %630 = vst [vmem:[#allocation3 + $0x40] sm:$0xff] %v584
        %631 = vst [vmem:[#allocation3 + $0x48] sm:$0xff] %v589
        %632 = vst [vmem:[#allocation3 + $0x50] sm:$0xff] %v594
        %633 = vst [vmem:[#allocation3 + $0x58] sm:$0xff] %v599
        %634 = vst [vmem:[#allocation3 + $0x60] sm:$0xff] %v604
        %635 = vst [vmem:[#allocation3 + $0x68] sm:$0xff] %v609
        %636 = vst [vmem:[#allocation3 + $0x70] sm:$0xff] %v614
        %637 = vst [vmem:[#allocation3 + $0x78] sm:$0xff] %v619
        %v638 = vld [vmem:[#allocation3] sm:$0xff]
        %v639 = vld [vmem:[#allocation3 + $0x8] sm:$0xff]
        %v640 = vld [vmem:[#allocation3 + $0x10] sm:$0xff]
        %v641 = vld [vmem:[#allocation3 + $0x18] sm:$0xff]
        %v642 = vld [vmem:[#allocation3 + $0x20] sm:$0xff]
        %v643 = vld [vmem:[#allocation3 + $0x28] sm:$0xff]
        %v644 = vld [vmem:[#allocation3 + $0x30] sm:$0xff]
        %v645 = vld [vmem:[#allocation3 + $0x38] sm:$0xff]
        %v646 = vld [vmem:[#allocation3 + $0x40] sm:$0xff]
        %v647 = vld [vmem:[#allocation3 + $0x48] sm:$0xff]
        %v648 = vld [vmem:[#allocation3 + $0x50] sm:$0xff]
        %v649 = vld [vmem:[#allocation3 + $0x58] sm:$0xff]
        %v650 = vld [vmem:[#allocation3 + $0x60] sm:$0xff]
        %v651 = vld [vmem:[#allocation3 + $0x68] sm:$0xff]
        %v652 = vld [vmem:[#allocation3 + $0x70] sm:$0xff]
        %v653 = vld [vmem:[#allocation3 + $0x78] sm:$0xff]
        %v654 = vld [vmem:[#allocation2 + $0x1] sm:$0xff]
        %v655 = vld [vmem:[#allocation2 + $0x9] sm:$0xff]
        %v656 = vld [vmem:[#allocation2 + $0x19] sm:$0xff]
        %v657 = vld [vmem:[#allocation2 + $0x21] sm:$0xff]
        %v658 = vld [vmem:[#allocation2 + $0x31] sm:$0xff]
        %v659 = vld [vmem:[#allocation2 + $0x39] sm:$0xff]
        %v660 = vld [vmem:[#allocation2 + $0x49] sm:$0xff]
        %v661 = vld [vmem:[#allocation2 + $0x51] sm:$0xff]
        %v662 = vld [vmem:[#allocation2 + $0x61] sm:$0xff]
        %v663 = vld [vmem:[#allocation2 + $0x69] sm:$0xff]
        %v664 = vld [vmem:[#allocation2 + $0x79] sm:$0xff]
        %v665 = vld [vmem:[#allocation2 + $0x81] sm:$0xff]
        %v666 = vld [vmem:[#allocation2 + $0x91] sm:$0xff]
        %v667 = vld [vmem:[#allocation2 + $0x99] sm:$0xff]
        %v668 = vld [vmem:[#allocation2 + $0xa9] sm:$0xff]
        %v669 = vld [vmem:[#allocation2 + $0xb1] sm:$0xff]
        %s670 = scalar_lea.vmem [#allocation10], 128
        %v671 = vld [vmem:[%s670] sm:$0xff]
        %v672 = vld [vmem:[%s670 + $0x8] sm:$0xff]
        %v673 = vld [vmem:[%s670 + $0x10] sm:$0xff]
        %v674 = vld [vmem:[%s670 + $0x18] sm:$0xff]
        %v675 = vld [vmem:[%s670 + $0x20] sm:$0xff]
        %v676 = vld [vmem:[%s670 + $0x28] sm:$0xff]
        %v677 = vld [vmem:[%s670 + $0x30] sm:$0xff]
        %v678 = vld [vmem:[%s670 + $0x38] sm:$0xff]
        %v679 = vld [vmem:[%s670 + $0x40] sm:$0xff]
        %v680 = vld [vmem:[%s670 + $0x48] sm:$0xff]
        %v681 = vld [vmem:[%s670 + $0x50] sm:$0xff]
        %v682 = vld [vmem:[%s670 + $0x58] sm:$0xff]
        %v683 = vld [vmem:[%s670 + $0x60] sm:$0xff]
        %v684 = vld [vmem:[%s670 + $0x68] sm:$0xff]
        %v685 = vld [vmem:[%s670 + $0x70] sm:$0xff]
        %v686 = vld [vmem:[%s670 + $0x78] sm:$0xff]
        %687 = vmatprep.subr.mxu0 0.0
        %688 = vmatpush1.msra.mxu0 %v671
        %689 = vmatprep.subr.mxu0 0.0
        %690 = vmatpush1.msra.mxu0 %v672
        %691 = vmatprep.subr.mxu0 0.0
        %692 = vmatpush1.msra.mxu0 %v673
        %693 = vmatprep.subr.mxu0 0.0
        %694 = vmatpush1.msra.mxu0 %v674
        %695 = vmatprep.subr.mxu0 0.0
        %696 = vmatpush1.msra.mxu0 %v675
        %697 = vmatprep.subr.mxu0 0.0
        %698 = vmatpush1.msra.mxu0 %v676
        %699 = vmatprep.subr.mxu0 0.0
        %700 = vmatpush1.msra.mxu0 %v677
        %701 = vmatprep.subr.mxu0 0.0
        %702 = vmatpush1.msra.mxu0 %v678
        %703 = vmatprep.subr.mxu0 0.0
        %704 = vmatpush1.msra.mxu0 %v679
        %705 = vmatprep.subr.mxu0 0.0
        %706 = vmatpush1.msra.mxu0 %v680
        %707 = vmatprep.subr.mxu0 0.0
        %708 = vmatpush1.msra.mxu0 %v681
        %709 = vmatprep.subr.mxu0 0.0
        %710 = vmatpush1.msra.mxu0 %v682
        %711 = vmatprep.subr.mxu0 0.0
        %712 = vmatpush1.msra.mxu0 %v683
        %713 = vmatprep.subr.mxu0 0.0
        %714 = vmatpush1.msra.mxu0 %v684
        %715 = vmatprep.subr.mxu0 0.0
        %716 = vmatpush1.msra.mxu0 %v685
        %717 = vmatprep.subr.mxu0 0.0
        %718 = vmatpush1.msra.mxu0 %v686
        %719 = vmatprep.subr.mxu0 0.0
        %720 = vmatpush1.msra.mxu0 0.0
        %721 = vmatprep.subr.mxu0 0.0
        %722 = vmatpush1.msra.mxu0 0.0
        %723 = vmatprep.subr.mxu0 0.0
        %724 = vmatpush1.msra.mxu0 0.0
        %725 = vmatprep.subr.mxu0 0.0
        %726 = vmatpush1.msra.mxu0 0.0
        %727 = vmatprep.subr.mxu0 0.0
        %728 = vmatpush1.msra.mxu0 0.0
        %729 = vmatprep.subr.mxu0 0.0
        %730 = vmatpush1.msra.mxu0 0.0
        %731 = vmatprep.subr.mxu0 0.0
        %732 = vmatpush1.msra.mxu0 0.0
        %733 = vmatprep.subr.mxu0 0.0
        %734 = vmatpush1.msra.mxu0 0.0
        %735 = vmatprep.subr.mxu0 0.0
        %736 = vmatpush1.msra.mxu0 0.0
        %737 = vmatprep.subr.mxu0 0.0
        %738 = vmatpush1.msra.mxu0 0.0
        %739 = vmatprep.subr.mxu0 0.0
        %740 = vmatpush1.msra.mxu0 0.0
        %741 = vmatprep.subr.mxu0 0.0
        %742 = vmatpush1.msra.mxu0 0.0
        %743 = vmatprep.subr.mxu0 0.0
        %744 = vmatpush1.msra.mxu0 0.0
        %745 = vmatprep.subr.mxu0 0.0
        %746 = vmatpush1.msra.mxu0 0.0
        %747 = vmatprep.subr.mxu0 0.0
        %748 = vmatpush1.msra.mxu0 0.0
        %749 = vmatprep.subr.mxu0 0.0
        %750 = vmatpush1.msra.mxu0 0.0
        %751 = vmatprep.mubr.f32.mxu0 0.0
        %752 = vmatmul.mubr.f32.gmra.mrb[0].mxu0 %v654
        %v753 = vpop.f32.mrb[0].mxu0
        %v754 = vadd.f32 0.0, %v753
        %v755 = vpop.f32.mrb[0].mxu0
        %756 = vmatprep.mubr.f32.mxu0 0.0
        %757 = vmatmul.mubr.f32.gmra.mrb[0].mxu0 %v655
        %v758 = vpop.f32.mrb[0].mxu0
        %v759 = vadd.f32 0.0, %v758
        %v760 = vpop.f32.mrb[0].mxu0
        %761 = vmatprep.mubr.f32.mxu0 0.0
        %762 = vmatmul.mubr.f32.gmra.mrb[0].mxu0 %v656
        %v763 = vpop.f32.mrb[0].mxu0
        %v764 = vadd.f32 0.0, %v763
        %v765 = vpop.f32.mrb[0].mxu0
        %766 = vmatprep.mubr.f32.mxu0 0.0
        %767 = vmatmul.mubr.f32.gmra.mrb[0].mxu0 %v657
        %v768 = vpop.f32.mrb[0].mxu0
        %v769 = vadd.f32 0.0, %v768
        %v770 = vpop.f32.mrb[0].mxu0
        %771 = vmatprep.mubr.f32.mxu0 0.0
        %772 = vmatmul.mubr.f32.gmra.mrb[0].mxu0 %v658
        %v773 = vpop.f32.mrb[0].mxu0
        %v774 = vadd.f32 0.0, %v773
        %v775 = vpop.f32.mrb[0].mxu0
        %776 = vmatprep.mubr.f32.mxu0 0.0
        %777 = vmatmul.mubr.f32.gmra.mrb[0].mxu0 %v659
        %v778 = vpop.f32.mrb[0].mxu0
        %v779 = vadd.f32 0.0, %v778
        %v780 = vpop.f32.mrb[0].mxu0
        %781 = vmatprep.mubr.f32.mxu0 0.0
        %782 = vmatmul.mubr.f32.gmra.mrb[0].mxu0 %v660
        %v783 = vpop.f32.mrb[0].mxu0
        %v784 = vadd.f32 0.0, %v783
        %v785 = vpop.f32.mrb[0].mxu0
        %786 = vmatprep.mubr.f32.mxu0 0.0
        %787 = vmatmul.mubr.f32.gmra.mrb[0].mxu0 %v661
        %v788 = vpop.f32.mrb[0].mxu0
        %v789 = vadd.f32 0.0, %v788
        %v790 = vpop.f32.mrb[0].mxu0
        %791 = vmatprep.mubr.f32.mxu0 0.0
        %792 = vmatmul.mubr.f32.gmra.mrb[0].mxu0 %v662
        %v793 = vpop.f32.mrb[0].mxu0
        %v794 = vadd.f32 0.0, %v793
        %v795 = vpop.f32.mrb[0].mxu0
        %796 = vmatprep.mubr.f32.mxu0 0.0
        %797 = vmatmul.mubr.f32.gmra.mrb[0].mxu0 %v663
        %v798 = vpop.f32.mrb[0].mxu0
        %v799 = vadd.f32 0.0, %v798
        %v800 = vpop.f32.mrb[0].mxu0
        %801 = vmatprep.mubr.f32.mxu0 0.0
        %802 = vmatmul.mubr.f32.gmra.mrb[0].mxu0 %v664
        %v803 = vpop.f32.mrb[0].mxu0
        %v804 = vadd.f32 0.0, %v803
        %v805 = vpop.f32.mrb[0].mxu0
        %806 = vmatprep.mubr.f32.mxu0 0.0
        %807 = vmatmul.mubr.f32.gmra.mrb[0].mxu0 %v665
        %v808 = vpop.f32.mrb[0].mxu0
        %v809 = vadd.f32 0.0, %v808
        %v810 = vpop.f32.mrb[0].mxu0
        %811 = vmatprep.mubr.f32.mxu0 0.0
        %812 = vmatmul.mubr.f32.gmra.mrb[0].mxu0 %v666
        %v813 = vpop.f32.mrb[0].mxu0
        %v814 = vadd.f32 0.0, %v813
        %v815 = vpop.f32.mrb[0].mxu0
        %816 = vmatprep.mubr.f32.mxu0 0.0
        %817 = vmatmul.mubr.f32.gmra.mrb[0].mxu0 %v667
        %v818 = vpop.f32.mrb[0].mxu0
        %v819 = vadd.f32 0.0, %v818
        %v820 = vpop.f32.mrb[0].mxu0
        %821 = vmatprep.mubr.f32.mxu0 0.0
        %822 = vmatmul.mubr.f32.gmra.mrb[0].mxu0 %v668
        %v823 = vpop.f32.mrb[0].mxu0
        %v824 = vadd.f32 0.0, %v823
        %v825 = vpop.f32.mrb[0].mxu0
        %826 = vmatprep.mubr.f32.mxu0 0.0
        %827 = vmatmul.mubr.f32.gmra.mrb[0].mxu0 %v669
        %v828 = vpop.f32.mrb[0].mxu0
        %v829 = vadd.f32 0.0, %v828
        %v830 = vpop.f32.mrb[0].mxu0
        %831 = vdwg.mxu0
        %v832 = vadd.f32 %v638, %v754
        %v833 = vadd.f32 %v639, %v759
        %v834 = vadd.f32 %v640, %v764
        %v835 = vadd.f32 %v641, %v769
        %v836 = vadd.f32 %v642, %v774
        %v837 = vadd.f32 %v643, %v779
        %v838 = vadd.f32 %v644, %v784
        %v839 = vadd.f32 %v645, %v789
        %v840 = vadd.f32 %v646, %v794
        %v841 = vadd.f32 %v647, %v799
        %v842 = vadd.f32 %v648, %v804
        %v843 = vadd.f32 %v649, %v809
        %v844 = vadd.f32 %v650, %v814
        %v845 = vadd.f32 %v651, %v819
        %v846 = vadd.f32 %v652, %v824
        %v847 = vadd.f32 %v653, %v829
        %848 = vst [vmem:[#allocation3] sm:$0xff] %v832
        %849 = vst [vmem:[#allocation3 + $0x8] sm:$0xff] %v833
        %850 = vst [vmem:[#allocation3 + $0x10] sm:$0xff] %v834
        %851 = vst [vmem:[#allocation3 + $0x18] sm:$0xff] %v835
        %852 = vst [vmem:[#allocation3 + $0x20] sm:$0xff] %v836
        %853 = vst [vmem:[#allocation3 + $0x28] sm:$0xff] %v837
        %854 = vst [vmem:[#allocation3 + $0x30] sm:$0xff] %v838
        %855 = vst [vmem:[#allocation3 + $0x38] sm:$0xff] %v839
        %856 = vst [vmem:[#allocation3 + $0x40] sm:$0xff] %v840
        %857 = vst [vmem:[#allocation3 + $0x48] sm:$0xff] %v841
        %858 = vst [vmem:[#allocation3 + $0x50] sm:$0xff] %v842
        %859 = vst [vmem:[#allocation3 + $0x58] sm:$0xff] %v843
        %860 = vst [vmem:[#allocation3 + $0x60] sm:$0xff] %v844
        %861 = vst [vmem:[#allocation3 + $0x68] sm:$0xff] %v845
        %862 = vst [vmem:[#allocation3 + $0x70] sm:$0xff] %v846
        %863 = vst [vmem:[#allocation3 + $0x78] sm:$0xff] %v847
        %v864 = vld [vmem:[#allocation3] sm:$0xff]
        %v865 = vld [vmem:[#allocation3 + $0x8] sm:$0xff]
        %v866 = vld [vmem:[#allocation3 + $0x10] sm:$0xff]
        %v867 = vld [vmem:[#allocation3 + $0x18] sm:$0xff]
        %v868 = vld [vmem:[#allocation3 + $0x20] sm:$0xff]
        %v869 = vld [vmem:[#allocation3 + $0x28] sm:$0xff]
        %v870 = vld [vmem:[#allocation3 + $0x30] sm:$0xff]
        %v871 = vld [vmem:[#allocation3 + $0x38] sm:$0xff]
        %v872 = vld [vmem:[#allocation3 + $0x40] sm:$0xff]
        %v873 = vld [vmem:[#allocation3 + $0x48] sm:$0xff]
        %v874 = vld [vmem:[#allocation3 + $0x50] sm:$0xff]
        %v875 = vld [vmem:[#allocation3 + $0x58] sm:$0xff]
        %v876 = vld [vmem:[#allocation3 + $0x60] sm:$0xff]
        %v877 = vld [vmem:[#allocation3 + $0x68] sm:$0xff]
        %v878 = vld [vmem:[#allocation3 + $0x70] sm:$0xff]
        %v879 = vld [vmem:[#allocation3 + $0x78] sm:$0xff]
        %v880 = vld [vmem:[#allocation2 + $0x2] sm:$0xff]
        %v881 = vld [vmem:[#allocation2 + $0xa] sm:$0xff]
        %v882 = vld [vmem:[#allocation2 + $0x1a] sm:$0xff]
        %v883 = vld [vmem:[#allocation2 + $0x22] sm:$0xff]
        %v884 = vld [vmem:[#allocation2 + $0x32] sm:$0xff]
        %v885 = vld [vmem:[#allocation2 + $0x3a] sm:$0xff]
        %v886 = vld [vmem:[#allocation2 + $0x4a] sm:$0xff]
        %v887 = vld [vmem:[#allocation2 + $0x52] sm:$0xff]
        %v888 = vld [vmem:[#allocation2 + $0x62] sm:$0xff]
        %v889 = vld [vmem:[#allocation2 + $0x6a] sm:$0xff]
        %v890 = vld [vmem:[#allocation2 + $0x7a] sm:$0xff]
        %v891 = vld [vmem:[#allocation2 + $0x82] sm:$0xff]
        %v892 = vld [vmem:[#allocation2 + $0x92] sm:$0xff]
        %v893 = vld [vmem:[#allocation2 + $0x9a] sm:$0xff]
        %v894 = vld [vmem:[#allocation2 + $0xaa] sm:$0xff]
        %v895 = vld [vmem:[#allocation2 + $0xb2] sm:$0xff]
        %s896 = scalar_lea.vmem [#allocation10], 256
        %v897 = vld [vmem:[%s896] sm:$0xff]
        %v898 = vld [vmem:[%s896 + $0x8] sm:$0xff]
        %v899 = vld [vmem:[%s896 + $0x10] sm:$0xff]
        %v900 = vld [vmem:[%s896 + $0x18] sm:$0xff]
        %v901 = vld [vmem:[%s896 + $0x20] sm:$0xff]
        %v902 = vld [vmem:[%s896 + $0x28] sm:$0xff]
        %v903 = vld [vmem:[%s896 + $0x30] sm:$0xff]
        %v904 = vld [vmem:[%s896 + $0x38] sm:$0xff]
        %v905 = vld [vmem:[%s896 + $0x40] sm:$0xff]
        %v906 = vld [vmem:[%s896 + $0x48] sm:$0xff]
        %v907 = vld [vmem:[%s896 + $0x50] sm:$0xff]
        %v908 = vld [vmem:[%s896 + $0x58] sm:$0xff]
        %v909 = vld [vmem:[%s896 + $0x60] sm:$0xff]
        %v910 = vld [vmem:[%s896 + $0x68] sm:$0xff]
        %v911 = vld [vmem:[%s896 + $0x70] sm:$0xff]
        %v912 = vld [vmem:[%s896 + $0x78] sm:$0xff]
        %913 = vmatprep.subr.mxu0 0.0
        %914 = vmatpush1.msra.mxu0 %v897
        %915 = vmatprep.subr.mxu0 0.0
        %916 = vmatpush1.msra.mxu0 %v898
        %917 = vmatprep.subr.mxu0 0.0
        %918 = vmatpush1.msra.mxu0 %v899
        %919 = vmatprep.subr.mxu0 0.0
        %920 = vmatpush1.msra.mxu0 %v900
        %921 = vmatprep.subr.mxu0 0.0
        %922 = vmatpush1.msra.mxu0 %v901
        %923 = vmatprep.subr.mxu0 0.0
        %924 = vmatpush1.msra.mxu0 %v902
        %925 = vmatprep.subr.mxu0 0.0
        %926 = vmatpush1.msra.mxu0 %v903
        %927 = vmatprep.subr.mxu0 0.0
        %928 = vmatpush1.msra.mxu0 %v904
        %929 = vmatprep.subr.mxu0 0.0
        %930 = vmatpush1.msra.mxu0 %v905
        %931 = vmatprep.subr.mxu0 0.0
        %932 = vmatpush1.msra.mxu0 %v906
        %933 = vmatprep.subr.mxu0 0.0
        %934 = vmatpush1.msra.mxu0 %v907
        %935 = vmatprep.subr.mxu0 0.0
        %936 = vmatpush1.msra.mxu0 %v908
        %937 = vmatprep.subr.mxu0 0.0
        %938 = vmatpush1.msra.mxu0 %v909
        %939 = vmatprep.subr.mxu0 0.0
        %940 = vmatpush1.msra.mxu0 %v910
        %941 = vmatprep.subr.mxu0 0.0
        %942 = vmatpush1.msra.mxu0 %v911
        %943 = vmatprep.subr.mxu0 0.0
        %944 = vmatpush1.msra.mxu0 %v912
        %945 = vmatprep.subr.mxu0 0.0
        %946 = vmatpush1.msra.mxu0 0.0
        %947 = vmatprep.subr.mxu0 0.0
        %948 = vmatpush1.msra.mxu0 0.0
        %949 = vmatprep.subr.mxu0 0.0
        %950 = vmatpush1.msra.mxu0 0.0
        %951 = vmatprep.subr.mxu0 0.0
        %952 = vmatpush1.msra.mxu0 0.0
        %953 = vmatprep.subr.mxu0 0.0
        %954 = vmatpush1.msra.mxu0 0.0
        %955 = vmatprep.subr.mxu0 0.0
        %956 = vmatpush1.msra.mxu0 0.0
        %957 = vmatprep.subr.mxu0 0.0
        %958 = vmatpush1.msra.mxu0 0.0
        %959 = vmatprep.subr.mxu0 0.0
        %960 = vmatpush1.msra.mxu0 0.0
        %961 = vmatprep.subr.mxu0 0.0
        %962 = vmatpush1.msra.mxu0 0.0
        %963 = vmatprep.subr.mxu0 0.0
        %964 = vmatpush1.msra.mxu0 0.0
        %965 = vmatprep.subr.mxu0 0.0
        %966 = vmatpush1.msra.mxu0 0.0
        %967 = vmatprep.subr.mxu0 0.0
        %968 = vmatpush1.msra.mxu0 0.0
        %969 = vmatprep.subr.mxu0 0.0
        %970 = vmatpush1.msra.mxu0 0.0
        %971 = vmatprep.subr.mxu0 0.0
        %972 = vmatpush1.msra.mxu0 0.0
        %973 = vmatprep.subr.mxu0 0.0
        %974 = vmatpush1.msra.mxu0 0.0
        %975 = vmatprep.subr.mxu0 0.0
        %976 = vmatpush1.msra.mxu0 0.0
        %977 = vmatprep.mubr.f32.mxu0 0.0
        %978 = vmatmul.mubr.f32.gmra.mrb[0].mxu0 %v880
        %v979 = vpop.f32.mrb[0].mxu0
        %v980 = vadd.f32 0.0, %v979
        %v981 = vpop.f32.mrb[0].mxu0
        %982 = vmatprep.mubr.f32.mxu0 0.0
        %983 = vmatmul.mubr.f32.gmra.mrb[0].mxu0 %v881
        %v984 = vpop.f32.mrb[0].mxu0
        %v985 = vadd.f32 0.0, %v984
        %v986 = vpop.f32.mrb[0].mxu0
        %987 = vmatprep.mubr.f32.mxu0 0.0
        %988 = vmatmul.mubr.f32.gmra.mrb[0].mxu0 %v882
        %v989 = vpop.f32.mrb[0].mxu0
        %v990 = vadd.f32 0.0, %v989
        %v991 = vpop.f32.mrb[0].mxu0
        %992 = vmatprep.mubr.f32.mxu0 0.0
        %993 = vmatmul.mubr.f32.gmra.mrb[0].mxu0 %v883
        %v994 = vpop.f32.mrb[0].mxu0
        %v995 = vadd.f32 0.0, %v994
        %v996 = vpop.f32.mrb[0].mxu0
        %997 = vmatprep.mubr.f32.mxu0 0.0
        %998 = vmatmul.mubr.f32.gmra.mrb[0].mxu0 %v884
        %v999 = vpop.f32.mrb[0].mxu0
        %v1000 = vadd.f32 0.0, %v999
        %v1001 = vpop.f32.mrb[0].mxu0
        %1002 = vmatprep.mubr.f32.mxu0 0.0
        %1003 = vmatmul.mubr.f32.gmra.mrb[0].mxu0 %v885
        %v1004 = vpop.f32.mrb[0].mxu0
        %v1005 = vadd.f32 0.0, %v1004
        %v1006 = vpop.f32.mrb[0].mxu0
        %1007 = vmatprep.mubr.f32.mxu0 0.0
        %1008 = vmatmul.mubr.f32.gmra.mrb[0].mxu0 %v886
        %v1009 = vpop.f32.mrb[0].mxu0
        %v1010 = vadd.f32 0.0, %v1009
        %v1011 = vpop.f32.mrb[0].mxu0
        %1012 = vmatprep.mubr.f32.mxu0 0.0
        %1013 = vmatmul.mubr.f32.gmra.mrb[0].mxu0 %v887
        %v1014 = vpop.f32.mrb[0].mxu0
        %v1015 = vadd.f32 0.0, %v1014
        %v1016 = vpop.f32.mrb[0].mxu0
        %1017 = vmatprep.mubr.f32.mxu0 0.0
        %1018 = vmatmul.mubr.f32.gmra.mrb[0].mxu0 %v888
        %v1019 = vpop.f32.mrb[0].mxu0
        %v1020 = vadd.f32 0.0, %v1019
        %v1021 = vpop.f32.mrb[0].mxu0
        %1022 = vmatprep.mubr.f32.mxu0 0.0
        %1023 = vmatmul.mubr.f32.gmra.mrb[0].mxu0 %v889
        %v1024 = vpop.f32.mrb[0].mxu0
        %v1025 = vadd.f32 0.0, %v1024
        %v1026 = vpop.f32.mrb[0].mxu0
        %1027 = vmatprep.mubr.f32.mxu0 0.0
        %1028 = vmatmul.mubr.f32.gmra.mrb[0].mxu0 %v890
        %v1029 = vpop.f32.mrb[0].mxu0
        %v1030 = vadd.f32 0.0, %v1029
        %v1031 = vpop.f32.mrb[0].mxu0
        %1032 = vmatprep.mubr.f32.mxu0 0.0
        %1033 = vmatmul.mubr.f32.gmra.mrb[0].mxu0 %v891
        %v1034 = vpop.f32.mrb[0].mxu0
        %v1035 = vadd.f32 0.0, %v1034
        %v1036 = vpop.f32.mrb[0].mxu0
        %1037 = vmatprep.mubr.f32.mxu0 0.0
        %1038 = vmatmul.mubr.f32.gmra.mrb[0].mxu0 %v892
        %v1039 = vpop.f32.mrb[0].mxu0
        %v1040 = vadd.f32 0.0, %v1039
        %v1041 = vpop.f32.mrb[0].mxu0
        %1042 = vmatprep.mubr.f32.mxu0 0.0
        %1043 = vmatmul.mubr.f32.gmra.mrb[0].mxu0 %v893
        %v1044 = vpop.f32.mrb[0].mxu0
        %v1045 = vadd.f32 0.0, %v1044
        %v1046 = vpop.f32.mrb[0].mxu0
        %1047 = vmatprep.mubr.f32.mxu0 0.0
        %1048 = vmatmul.mubr.f32.gmra.mrb[0].mxu0 %v894
        %v1049 = vpop.f32.mrb[0].mxu0
        %v1050 = vadd.f32 0.0, %v1049
        %v1051 = vpop.f32.mrb[0].mxu0
        %1052 = vmatprep.mubr.f32.mxu0 0.0
        %1053 = vmatmul.mubr.f32.gmra.mrb[0].mxu0 %v895
        %v1054 = vpop.f32.mrb[0].mxu0
        %v1055 = vadd.f32 0.0, %v1054
        %v1056 = vpop.f32.mrb[0].mxu0
        %1057 = vdwg.mxu0
        %v1058 = vadd.f32 %v864, %v980
        %v1059 = vadd.f32 %v865, %v985
        %v1060 = vadd.f32 %v866, %v990
        %v1061 = vadd.f32 %v867, %v995
        %v1062 = vadd.f32 %v868, %v1000
        %v1063 = vadd.f32 %v869, %v1005
        %v1064 = vadd.f32 %v870, %v1010
        %v1065 = vadd.f32 %v871, %v1015
        %v1066 = vadd.f32 %v872, %v1020
        %v1067 = vadd.f32 %v873, %v1025
        %v1068 = vadd.f32 %v874, %v1030
        %v1069 = vadd.f32 %v875, %v1035
        %v1070 = vadd.f32 %v876, %v1040
        %v1071 = vadd.f32 %v877, %v1045
        %v1072 = vadd.f32 %v878, %v1050
        %v1073 = vadd.f32 %v879, %v1055
        %1074 = vst [vmem:[#allocation3] sm:$0xff] %v1058
        %1075 = vst [vmem:[#allocation3 + $0x8] sm:$0xff] %v1059
        %1076 = vst [vmem:[#allocation3 + $0x10] sm:$0xff] %v1060
        %1077 = vst [vmem:[#allocation3 + $0x18] sm:$0xff] %v1061
        %1078 = vst [vmem:[#allocation3 + $0x20] sm:$0xff] %v1062
        %1079 = vst [vmem:[#allocation3 + $0x28] sm:$0xff] %v1063
        %1080 = vst [vmem:[#allocation3 + $0x30] sm:$0xff] %v1064
        %1081 = vst [vmem:[#allocation3 + $0x38] sm:$0xff] %v1065
        %1082 = vst [vmem:[#allocation3 + $0x40] sm:$0xff] %v1066
        %1083 = vst [vmem:[#allocation3 + $0x48] sm:$0xff] %v1067
        %1084 = vst [vmem:[#allocation3 + $0x50] sm:$0xff] %v1068
        %1085 = vst [vmem:[#allocation3 + $0x58] sm:$0xff] %v1069
        %1086 = vst [vmem:[#allocation3 + $0x60] sm:$0xff] %v1070
        %1087 = vst [vmem:[#allocation3 + $0x68] sm:$0xff] %v1071
        %1088 = vst [vmem:[#allocation3 + $0x70] sm:$0xff] %v1072
        %1089 = vst [vmem:[#allocation3 + $0x78] sm:$0xff] %v1073
        %v1090 = vld [vmem:[#allocation3] sm:$0xff]
        %v1091 = vld [vmem:[#allocation3 + $0x8] sm:$0xff]
        %v1092 = vld [vmem:[#allocation3 + $0x10] sm:$0xff]
        %v1093 = vld [vmem:[#allocation3 + $0x18] sm:$0xff]
        %v1094 = vld [vmem:[#allocation3 + $0x20] sm:$0xff]
        %v1095 = vld [vmem:[#allocation3 + $0x28] sm:$0xff]
        %v1096 = vld [vmem:[#allocation3 + $0x30] sm:$0xff]
        %v1097 = vld [vmem:[#allocation3 + $0x38] sm:$0xff]
        %v1098 = vld [vmem:[#allocation3 + $0x40] sm:$0xff]
        %v1099 = vld [vmem:[#allocation3 + $0x48] sm:$0xff]
        %v1100 = vld [vmem:[#allocation3 + $0x50] sm:$0xff]
        %v1101 = vld [vmem:[#allocation3 + $0x58] sm:$0xff]
        %v1102 = vld [vmem:[#allocation3 + $0x60] sm:$0xff]
        %v1103 = vld [vmem:[#allocation3 + $0x68] sm:$0xff]
        %v1104 = vld [vmem:[#allocation3 + $0x70] sm:$0xff]
        %v1105 = vld [vmem:[#allocation3 + $0x78] sm:$0xff]
        %v1106 = vld [vmem:[%s2] sm:$0x1]
        %v1108 = vlaneseq
        %v1109 = vshrl.u32 %v1108, 7
        %v1110 = vsub.s32 0, %v1109
        %v1111 = vrot.slane %v1106, %v1110
        %v1113 = vmul.f32 %v1090, %v1111
        %v1114 = vmul.f32 %v1091, %v1111
        %v1115 = vmul.f32 %v1092, %v1111
        %v1116 = vmul.f32 %v1093, %v1111
        %v1117 = vmul.f32 %v1094, %v1111
        %v1118 = vmul.f32 %v1095, %v1111
        %v1119 = vmul.f32 %v1096, %v1111
        %v1120 = vmul.f32 %v1097, %v1111
        %v1121 = vmul.f32 %v1098, %v1111
        %v1122 = vmul.f32 %v1099, %v1111
        %v1123 = vmul.f32 %v1100, %v1111
        %v1124 = vmul.f32 %v1101, %v1111
        %v1125 = vmul.f32 %v1102, %v1111
        %v1126 = vmul.f32 %v1103, %v1111
        %v1127 = vmul.f32 %v1104, %v1111
        %v1128 = vmul.f32 %v1105, %v1111
        %v1129 = vld [vmem:[%s3] sm:$0x1]
        %v1131 = vlaneseq
        %v1132 = vshrl.u32 %v1131, 7
        %v1133 = vsub.s32 0, %v1132
        %v1134 = vrot.slane %v1129, %v1133
        %v1136 = vadd.f32 %v1113, %v1134
        %v1137 = vadd.f32 %v1114, %v1134
        %v1138 = vadd.f32 %v1115, %v1134
        %v1139 = vadd.f32 %v1116, %v1134
        %v1140 = vadd.f32 %v1117, %v1134
        %v1141 = vadd.f32 %v1118, %v1134
        %v1142 = vadd.f32 %v1119, %v1134
        %v1143 = vadd.f32 %v1120, %v1134
        %v1144 = vadd.f32 %v1121, %v1134
        %v1145 = vadd.f32 %v1122, %v1134
        %v1146 = vadd.f32 %v1123, %v1134
        %v1147 = vadd.f32 %v1124, %v1134
        %v1148 = vadd.f32 %v1125, %v1134
        %v1149 = vadd.f32 %v1126, %v1134
        %v1150 = vadd.f32 %v1127, %v1134
        %v1151 = vadd.f32 %v1128, %v1134
        %v1152 = vmax.f32 %v1136, 0.0
        %v1153 = vmax.f32 %v1137, 0.0
        %v1154 = vmax.f32 %v1138, 0.0
        %v1155 = vmax.f32 %v1139, 0.0
        %v1156 = vmax.f32 %v1140, 0.0
        %v1157 = vmax.f32 %v1141, 0.0
        %v1158 = vmax.f32 %v1142, 0.0
        %v1159 = vmax.f32 %v1143, 0.0
        %v1160 = vmax.f32 %v1144, 0.0
        %v1161 = vmax.f32 %v1145, 0.0
        %v1162 = vmax.f32 %v1146, 0.0
        %v1163 = vmax.f32 %v1147, 0.0
        %v1164 = vmax.f32 %v1148, 0.0
        %v1165 = vmax.f32 %v1149, 0.0
        %v1166 = vmax.f32 %v1150, 0.0
        %v1167 = vmax.f32 %v1151, 0.0
        %1168 = vst [vmem:[#allocation3] sm:$0xff] %v1152
        %1169 = vst [vmem:[#allocation3 + $0x8] sm:$0xff] %v1153
        %1170 = vst [vmem:[#allocation3 + $0x10] sm:$0xff] %v1154
        %1171 = vst [vmem:[#allocation3 + $0x18] sm:$0xff] %v1155
        %1172 = vst [vmem:[#allocation3 + $0x20] sm:$0xff] %v1156
        %1173 = vst [vmem:[#allocation3 + $0x28] sm:$0xff] %v1157
        %1174 = vst [vmem:[#allocation3 + $0x30] sm:$0xff] %v1158
        %1175 = vst [vmem:[#allocation3 + $0x38] sm:$0xff] %v1159
        %1176 = vst [vmem:[#allocation3 + $0x40] sm:$0xff] %v1160
        %1177 = vst [vmem:[#allocation3 + $0x48] sm:$0xff] %v1161
        %1178 = vst [vmem:[#allocation3 + $0x50] sm:$0xff] %v1162
        %1179 = vst [vmem:[#allocation3 + $0x58] sm:$0xff] %v1163
        %1180 = vst [vmem:[#allocation3 + $0x60] sm:$0xff] %v1164
        %1181 = vst [vmem:[#allocation3 + $0x68] sm:$0xff] %v1165
        %1182 = vst [vmem:[#allocation3 + $0x70] sm:$0xff] %v1166
        %1183 = vst [vmem:[#allocation3 + $0x78] sm:$0xff] %v1167
        %v1184 = vld [vmem:[#allocation3] ss:$2 sm:$0xff]
        %s1185 = scalar_lea.vmem [#allocation3], 16
        %v1186 = vld [vmem:[%s1185] ss:$2 sm:$0xff]
        %s1187 = scalar_lea.vmem [#allocation3], 32
        %v1188 = vld [vmem:[%s1187] ss:$2 sm:$0xff]
        %s1189 = scalar_lea.vmem [#allocation3], 48
        %v1190 = vld [vmem:[%s1189] ss:$2 sm:$0xff]
        %s1191 = scalar_lea.vmem [#allocation3], 64
        %v1192 = vld [vmem:[%s1191] ss:$2 sm:$0xff]
        %s1193 = scalar_lea.vmem [#allocation3], 80
        %v1194 = vld [vmem:[%s1193] ss:$2 sm:$0xff]
        %s1195 = scalar_lea.vmem [#allocation3], 96
        %v1196 = vld [vmem:[%s1195] ss:$2 sm:$0xff]
        %s1197 = scalar_lea.vmem [#allocation3], 112
        %v1198 = vld [vmem:[%s1197] ss:$2 sm:$0xff]
        %s1199 = scalar_lea.vmem [#allocation3], 1
        %v1200 = vld [vmem:[%s1199] ss:$2 sm:$0xff]
        %s1201 = scalar_lea.vmem [#allocation3], 17
        %v1202 = vld [vmem:[%s1201] ss:$2 sm:$0xff]
        %s1203 = scalar_lea.vmem [#allocation3], 33
        %v1204 = vld [vmem:[%s1203] ss:$2 sm:$0xff]
        %s1205 = scalar_lea.vmem [#allocation3], 49
        %v1206 = vld [vmem:[%s1205] ss:$2 sm:$0xff]
        %s1207 = scalar_lea.vmem [#allocation3], 65
        %v1208 = vld [vmem:[%s1207] ss:$2 sm:$0xff]
        %s1209 = scalar_lea.vmem [#allocation3], 81
        %v1210 = vld [vmem:[%s1209] ss:$2 sm:$0xff]
        %s1211 = scalar_lea.vmem [#allocation3], 97
        %v1212 = vld [vmem:[%s1211] ss:$2 sm:$0xff]
        %s1213 = scalar_lea.vmem [#allocation3], 113
        %v1214 = vld [vmem:[%s1213] ss:$2 sm:$0xff]
        %v1215 = vmax.f32 %v1184, %v1200
        %v1216 = vmax.f32 %v1186, %v1202
        %v1217 = vmax.f32 %v1188, %v1204
        %v1218 = vmax.f32 %v1190, %v1206
        %v1219 = vmax.f32 %v1192, %v1208
        %v1220 = vmax.f32 %v1194, %v1210
        %v1221 = vmax.f32 %v1196, %v1212
        %v1222 = vmax.f32 %v1198, %v1214
        %1223 = vrot.lane.b32.xlu0 %v1215, 120
        %v1224 = vpop.permute.xlu0 %1223
        %1225 = vrot.lane.b32.xlu0 %v1216, 120
        %v1226 = vpop.permute.xlu0 %1225
        %1227 = vrot.lane.b32.xlu0 %v1217, 120
        %v1228 = vpop.permute.xlu0 %1227
        %1229 = vrot.lane.b32.xlu0 %v1218, 120
        %v1230 = vpop.permute.xlu0 %1229
        %1231 = vrot.lane.b32.xlu0 %v1219, 120
        %v1232 = vpop.permute.xlu0 %1231
        %1233 = vrot.lane.b32.xlu0 %v1220, 120
        %v1234 = vpop.permute.xlu0 %1233
        %1235 = vrot.lane.b32.xlu0 %v1221, 120
        %v1236 = vpop.permute.xlu0 %1235
        %1237 = vrot.lane.b32.xlu0 %v1222, 120
        %v1238 = vpop.permute.xlu0 %1237
        %v1239 = vmax.f32 %v1215, %v1224
        %v1240 = vmax.f32 %v1216, %v1226
        %v1241 = vmax.f32 %v1217, %v1228
        %v1242 = vmax.f32 %v1218, %v1230
        %v1243 = vmax.f32 %v1219, %v1232
        %v1244 = vmax.f32 %v1220, %v1234
        %v1245 = vmax.f32 %v1221, %v1236
        %v1246 = vmax.f32 %v1222, %v1238
        %1247 = vst [vmem:[#allocation4] sm:$0x1] 0.0
        %1248 = vst [vmem:[#allocation4 + $0x10] sm:$0x1] 0.0
        %1249 = vst [vmem:[#allocation4 + $0x20] sm:$0x1] 0.0
        %1250 = vst [vmem:[#allocation4 + $0x30] sm:$0x1] 0.0
        %1251 = vst [vmem:[#allocation4 + $0x40] sm:$0x1] 0.0
        %1252 = vst [vmem:[#allocation4 + $0x50] sm:$0x1] 0.0
        %1253 = vst [vmem:[#allocation4 + $0x60] sm:$0x1] 0.0
        %1254 = vst [vmem:[#allocation4 + $0x70] sm:$0x1] 0.0
        %1255 = vst [vmem:[#allocation4 + $0x9] sm:$0x1] 0.0
        %1256 = vst [vmem:[#allocation4 + $0x19] sm:$0x1] 0.0
        %1257 = vst [vmem:[#allocation4 + $0x29] sm:$0x1] 0.0
        %1258 = vst [vmem:[#allocation4 + $0x39] sm:$0x1] 0.0
        %1259 = vst [vmem:[#allocation4 + $0x49] sm:$0x1] 0.0
        %1260 = vst [vmem:[#allocation4 + $0x59] sm:$0x1] 0.0
        %1261 = vst [vmem:[#allocation4 + $0x69] sm:$0x1] 0.0
        %1262 = vst [vmem:[#allocation4 + $0x79] sm:$0x1] 0.0
        %1263 = vst [vmem:[#allocation4 + $0x1] sm:$0xff] %v1239
        %1264 = vst [vmem:[#allocation4 + $0x11] sm:$0xff] %v1240
        %1265 = vst [vmem:[#allocation4 + $0x21] sm:$0xff] %v1241
        %1266 = vst [vmem:[#allocation4 + $0x31] sm:$0xff] %v1242
        %1267 = vst [vmem:[#allocation4 + $0x41] sm:$0xff] %v1243
        %1268 = vst [vmem:[#allocation4 + $0x51] sm:$0xff] %v1244
        %1269 = vst [vmem:[#allocation4 + $0x61] sm:$0xff] %v1245
        %1270 = vst [vmem:[#allocation4 + $0x71] sm:$0xff] %v1246
        %v1271 = vld [vmem:[#allocation4] sm:$0xff]
        %v1272 = vld [vmem:[#allocation4 + $0x10] sm:$0xff]
        %v1273 = vld [vmem:[#allocation4 + $0x20] sm:$0xff]
        %v1274 = vld [vmem:[#allocation4 + $0x30] sm:$0xff]
        %v1275 = vld [vmem:[#allocation4 + $0x40] sm:$0xff]
        %v1276 = vld [vmem:[#allocation4 + $0x50] sm:$0xff]
        %v1277 = vld [vmem:[#allocation4 + $0x60] sm:$0xff]
        %v1278 = vld [vmem:[#allocation4 + $0x70] sm:$0xff]
        %v1279 = vld [vmem:[#allocation12] sm:$0xff]
        %v1280 = vld [vmem:[#allocation12 + $0x8] sm:$0xff]
        %v1281 = vld [vmem:[#allocation12 + $0x10] sm:$0xff]
        %v1282 = vld [vmem:[#allocation12 + $0x18] sm:$0xff]
        %v1283 = vld [vmem:[#allocation12 + $0x20] sm:$0xff]
        %v1284 = vld [vmem:[#allocation12 + $0x28] sm:$0xff]
        %v1285 = vld [vmem:[#allocation12 + $0x30] sm:$0xff]
        %v1286 = vld [vmem:[#allocation12 + $0x38] sm:$0xff]
        %v1287 = vld [vmem:[#allocation12 + $0x40] sm:$0xff]
        %v1288 = vld [vmem:[#allocation12 + $0x48] sm:$0xff]
        %v1289 = vld [vmem:[#allocation12 + $0x50] sm:$0xff]
        %v1290 = vld [vmem:[#allocation12 + $0x58] sm:$0xff]
        %v1291 = vld [vmem:[#allocation12 + $0x60] sm:$0xff]
        %v1292 = vld [vmem:[#allocation12 + $0x68] sm:$0xff]
        %v1293 = vld [vmem:[#allocation12 + $0x70] sm:$0xff]
        %v1294 = vld [vmem:[#allocation12 + $0x78] sm:$0xff]
        %1295 = vmatprep.subr.mxu0 0.0
        %1296 = vmatpush1.msra.mxu0 %v1279
        %1297 = vmatprep.subr.mxu0 0.0
        %1298 = vmatpush1.msra.mxu0 %v1280
        %1299 = vmatprep.subr.mxu0 0.0
        %1300 = vmatpush1.msra.mxu0 %v1281
        %1301 = vmatprep.subr.mxu0 0.0
        %1302 = vmatpush1.msra.mxu0 %v1282
        %1303 = vmatprep.subr.mxu0 0.0
        %1304 = vmatpush1.msra.mxu0 %v1283
        %1305 = vmatprep.subr.mxu0 0.0
        %1306 = vmatpush1.msra.mxu0 %v1284
        %1307 = vmatprep.subr.mxu0 0.0
        %1308 = vmatpush1.msra.mxu0 %v1285
        %1309 = vmatprep.subr.mxu0 0.0
        %1310 = vmatpush1.msra.mxu0 %v1286
        %1311 = vmatprep.subr.mxu0 0.0
        %1312 = vmatpush1.msra.mxu0 %v1287
        %1313 = vmatprep.subr.mxu0 0.0
        %1314 = vmatpush1.msra.mxu0 %v1288
        %1315 = vmatprep.subr.mxu0 0.0
        %1316 = vmatpush1.msra.mxu0 %v1289
        %1317 = vmatprep.subr.mxu0 0.0
        %1318 = vmatpush1.msra.mxu0 %v1290
        %1319 = vmatprep.subr.mxu0 0.0
        %1320 = vmatpush1.msra.mxu0 %v1291
        %1321 = vmatprep.subr.mxu0 0.0
        %1322 = vmatpush1.msra.mxu0 %v1292
        %1323 = vmatprep.subr.mxu0 0.0
        %1324 = vmatpush1.msra.mxu0 %v1293
        %1325 = vmatprep.subr.mxu0 0.0
        %1326 = vmatpush1.msra.mxu0 %v1294
        %1327 = vmatprep.subr.mxu0 0.0
        %1328 = vmatpush1.msra.mxu0 0.0
        %1329 = vmatprep.subr.mxu0 0.0
        %1330 = vmatpush1.msra.mxu0 0.0
        %1331 = vmatprep.subr.mxu0 0.0
        %1332 = vmatpush1.msra.mxu0 0.0
        %1333 = vmatprep.subr.mxu0 0.0
        %1334 = vmatpush1.msra.mxu0 0.0
        %1335 = vmatprep.subr.mxu0 0.0
        %1336 = vmatpush1.msra.mxu0 0.0
        %1337 = vmatprep.subr.mxu0 0.0
        %1338 = vmatpush1.msra.mxu0 0.0
        %1339 = vmatprep.subr.mxu0 0.0
        %1340 = vmatpush1.msra.mxu0 0.0
        %1341 = vmatprep.subr.mxu0 0.0
        %1342 = vmatpush1.msra.mxu0 0.0
        %1343 = vmatprep.subr.mxu0 0.0
        %1344 = vmatpush1.msra.mxu0 0.0
        %1345 = vmatprep.subr.mxu0 0.0
        %1346 = vmatpush1.msra.mxu0 0.0
        %1347 = vmatprep.subr.mxu0 0.0
        %1348 = vmatpush1.msra.mxu0 0.0
        %1349 = vmatprep.subr.mxu0 0.0
        %1350 = vmatpush1.msra.mxu0 0.0
        %1351 = vmatprep.subr.mxu0 0.0
        %1352 = vmatpush1.msra.mxu0 0.0
        %1353 = vmatprep.subr.mxu0 0.0
        %1354 = vmatpush1.msra.mxu0 0.0
        %1355 = vmatprep.subr.mxu0 0.0
        %1356 = vmatpush1.msra.mxu0 0.0
        %1357 = vmatprep.subr.mxu0 0.0
        %1358 = vmatpush1.msra.mxu0 0.0
        %1359 = vmatprep.mubr.f32.mxu0 0.0
        %1360 = vmatmul.mubr.f32.gmra.mrb[0].mxu0 %v1271
        %v1361 = vpop.f32.mrb[0].mxu0
        %v1362 = vadd.f32 0.0, %v1361
        %v1363 = vpop.f32.mrb[0].mxu0
        %1364 = vmatprep.mubr.f32.mxu0 0.0
        %1365 = vmatmul.mubr.f32.gmra.mrb[0].mxu0 %v1272
        %v1366 = vpop.f32.mrb[0].mxu0
        %v1367 = vadd.f32 0.0, %v1366
        %v1368 = vpop.f32.mrb[0].mxu0
        %1369 = vmatprep.mubr.f32.mxu0 0.0
        %1370 = vmatmul.mubr.f32.gmra.mrb[0].mxu0 %v1273
        %v1371 = vpop.f32.mrb[0].mxu0
        %v1372 = vadd.f32 0.0, %v1371
        %v1373 = vpop.f32.mrb[0].mxu0
        %1374 = vmatprep.mubr.f32.mxu0 0.0
        %1375 = vmatmul.mubr.f32.gmra.mrb[0].mxu0 %v1274
        %v1376 = vpop.f32.mrb[0].mxu0
        %v1377 = vadd.f32 0.0, %v1376
        %v1378 = vpop.f32.mrb[0].mxu0
        %1379 = vmatprep.mubr.f32.mxu0 0.0
        %1380 = vmatmul.mubr.f32.gmra.mrb[0].mxu0 %v1275
        %v1381 = vpop.f32.mrb[0].mxu0
        %v1382 = vadd.f32 0.0, %v1381
        %v1383 = vpop.f32.mrb[0].mxu0
        %1384 = vmatprep.mubr.f32.mxu0 0.0
        %1385 = vmatmul.mubr.f32.gmra.mrb[0].mxu0 %v1276
        %v1386 = vpop.f32.mrb[0].mxu0
        %v1387 = vadd.f32 0.0, %v1386
        %v1388 = vpop.f32.mrb[0].mxu0
        %1389 = vmatprep.mubr.f32.mxu0 0.0
        %1390 = vmatmul.mubr.f32.gmra.mrb[0].mxu0 %v1277
        %v1391 = vpop.f32.mrb[0].mxu0
        %v1392 = vadd.f32 0.0, %v1391
        %v1393 = vpop.f32.mrb[0].mxu0
        %1394 = vmatprep.mubr.f32.mxu0 0.0
        %1395 = vmatmul.mubr.f32.gmra.mrb[0].mxu0 %v1278
        %v1396 = vpop.f32.mrb[0].mxu0
        %v1397 = vadd.f32 0.0, %v1396
        %v1398 = vpop.f32.mrb[0].mxu0
        %1399 = vdwg.mxu0
        %1400 = vst [vmem:[#allocation5] sm:$0xff] %v1362
        %1401 = vst [vmem:[#allocation5 + $0x8] sm:$0xff] %v1367
        %1402 = vst [vmem:[#allocation5 + $0x10] sm:$0xff] %v1372
        %1403 = vst [vmem:[#allocation5 + $0x18] sm:$0xff] %v1377
        %1404 = vst [vmem:[#allocation5 + $0x20] sm:$0xff] %v1382
        %1405 = vst [vmem:[#allocation5 + $0x28] sm:$0xff] %v1387
        %1406 = vst [vmem:[#allocation5 + $0x30] sm:$0xff] %v1392
        %1407 = vst [vmem:[#allocation5 + $0x38] sm:$0xff] %v1397
        %v1408 = vld [vmem:[#allocation5] sm:$0xff]
        %v1409 = vld [vmem:[#allocation5 + $0x8] sm:$0xff]
        %v1410 = vld [vmem:[#allocation5 + $0x10] sm:$0xff]
        %v1411 = vld [vmem:[#allocation5 + $0x18] sm:$0xff]
        %v1412 = vld [vmem:[#allocation5 + $0x20] sm:$0xff]
        %v1413 = vld [vmem:[#allocation5 + $0x28] sm:$0xff]
        %v1414 = vld [vmem:[#allocation5 + $0x30] sm:$0xff]
        %v1415 = vld [vmem:[#allocation5 + $0x38] sm:$0xff]
        %v1416 = vld [vmem:[#allocation4 + $0x1] sm:$0xff]
        %v1417 = vld [vmem:[#allocation4 + $0x11] sm:$0xff]
        %v1418 = vld [vmem:[#allocation4 + $0x21] sm:$0xff]
        %v1419 = vld [vmem:[#allocation4 + $0x31] sm:$0xff]
        %v1420 = vld [vmem:[#allocation4 + $0x41] sm:$0xff]
        %v1421 = vld [vmem:[#allocation4 + $0x51] sm:$0xff]
        %v1422 = vld [vmem:[#allocation4 + $0x61] sm:$0xff]
        %v1423 = vld [vmem:[#allocation4 + $0x71] sm:$0xff]
        %s1424 = scalar_lea.vmem [#allocation12], 128
        %v1425 = vld [vmem:[%s1424] sm:$0xff]
        %v1426 = vld [vmem:[%s1424 + $0x8] sm:$0xff]
        %v1427 = vld [vmem:[%s1424 + $0x10] sm:$0xff]
        %v1428 = vld [vmem:[%s1424 + $0x18] sm:$0xff]
        %v1429 = vld [vmem:[%s1424 + $0x20] sm:$0xff]
        %v1430 = vld [vmem:[%s1424 + $0x28] sm:$0xff]
        %v1431 = vld [vmem:[%s1424 + $0x30] sm:$0xff]
        %v1432 = vld [vmem:[%s1424 + $0x38] sm:$0xff]
        %v1433 = vld [vmem:[%s1424 + $0x40] sm:$0xff]
        %v1434 = vld [vmem:[%s1424 + $0x48] sm:$0xff]
        %v1435 = vld [vmem:[%s1424 + $0x50] sm:$0xff]
        %v1436 = vld [vmem:[%s1424 + $0x58] sm:$0xff]
        %v1437 = vld [vmem:[%s1424 + $0x60] sm:$0xff]
        %v1438 = vld [vmem:[%s1424 + $0x68] sm:$0xff]
        %v1439 = vld [vmem:[%s1424 + $0x70] sm:$0xff]
        %v1440 = vld [vmem:[%s1424 + $0x78] sm:$0xff]
        %1441 = vmatprep.subr.mxu0 0.0
        %1442 = vmatpush1.msra.mxu0 %v1425
        %1443 = vmatprep.subr.mxu0 0.0
        %1444 = vmatpush1.msra.mxu0 %v1426
        %1445 = vmatprep.subr.mxu0 0.0
        %1446 = vmatpush1.msra.mxu0 %v1427
        %1447 = vmatprep.subr.mxu0 0.0
        %1448 = vmatpush1.msra.mxu0 %v1428
        %1449 = vmatprep.subr.mxu0 0.0
        %1450 = vmatpush1.msra.mxu0 %v1429
        %1451 = vmatprep.subr.mxu0 0.0
        %1452 = vmatpush1.msra.mxu0 %v1430
        %1453 = vmatprep.subr.mxu0 0.0
        %1454 = vmatpush1.msra.mxu0 %v1431
        %1455 = vmatprep.subr.mxu0 0.0
        %1456 = vmatpush1.msra.mxu0 %v1432
        %1457 = vmatprep.subr.mxu0 0.0
        %1458 = vmatpush1.msra.mxu0 %v1433
        %1459 = vmatprep.subr.mxu0 0.0
        %1460 = vmatpush1.msra.mxu0 %v1434
        %1461 = vmatprep.subr.mxu0 0.0
        %1462 = vmatpush1.msra.mxu0 %v1435
        %1463 = vmatprep.subr.mxu0 0.0
        %1464 = vmatpush1.msra.mxu0 %v1436
        %1465 = vmatprep.subr.mxu0 0.0
        %1466 = vmatpush1.msra.mxu0 %v1437
        %1467 = vmatprep.subr.mxu0 0.0
        %1468 = vmatpush1.msra.mxu0 %v1438
        %1469 = vmatprep.subr.mxu0 0.0
        %1470 = vmatpush1.msra.mxu0 %v1439
        %1471 = vmatprep.subr.mxu0 0.0
        %1472 = vmatpush1.msra.mxu0 %v1440
        %1473 = vmatprep.subr.mxu0 0.0
        %1474 = vmatpush1.msra.mxu0 0.0
        %1475 = vmatprep.subr.mxu0 0.0
        %1476 = vmatpush1.msra.mxu0 0.0
        %1477 = vmatprep.subr.mxu0 0.0
        %1478 = vmatpush1.msra.mxu0 0.0
        %1479 = vmatprep.subr.mxu0 0.0
        %1480 = vmatpush1.msra.mxu0 0.0
        %1481 = vmatprep.subr.mxu0 0.0
        %1482 = vmatpush1.msra.mxu0 0.0
        %1483 = vmatprep.subr.mxu0 0.0
        %1484 = vmatpush1.msra.mxu0 0.0
        %1485 = vmatprep.subr.mxu0 0.0
        %1486 = vmatpush1.msra.mxu0 0.0
        %1487 = vmatprep.subr.mxu0 0.0
        %1488 = vmatpush1.msra.mxu0 0.0
        %1489 = vmatprep.subr.mxu0 0.0
        %1490 = vmatpush1.msra.mxu0 0.0
        %1491 = vmatprep.subr.mxu0 0.0
        %1492 = vmatpush1.msra.mxu0 0.0
        %1493 = vmatprep.subr.mxu0 0.0
        %1494 = vmatpush1.msra.mxu0 0.0
        %1495 = vmatprep.subr.mxu0 0.0
        %1496 = vmatpush1.msra.mxu0 0.0
        %1497 = vmatprep.subr.mxu0 0.0
        %1498 = vmatpush1.msra.mxu0 0.0
        %1499 = vmatprep.subr.mxu0 0.0
        %1500 = vmatpush1.msra.mxu0 0.0
        %1501 = vmatprep.subr.mxu0 0.0
        %1502 = vmatpush1.msra.mxu0 0.0
        %1503 = vmatprep.subr.mxu0 0.0
        %1504 = vmatpush1.msra.mxu0 0.0
        %1505 = vmatprep.mubr.f32.mxu0 0.0
        %1506 = vmatmul.mubr.f32.gmra.mrb[0].mxu0 %v1416
        %v1507 = vpop.f32.mrb[0].mxu0
        %v1508 = vadd.f32 0.0, %v1507
        %v1509 = vpop.f32.mrb[0].mxu0
        %1510 = vmatprep.mubr.f32.mxu0 0.0
        %1511 = vmatmul.mubr.f32.gmra.mrb[0].mxu0 %v1417
        %v1512 = vpop.f32.mrb[0].mxu0
        %v1513 = vadd.f32 0.0, %v1512
        %v1514 = vpop.f32.mrb[0].mxu0
        %1515 = vmatprep.mubr.f32.mxu0 0.0
        %1516 = vmatmul.mubr.f32.gmra.mrb[0].mxu0 %v1418
        %v1517 = vpop.f32.mrb[0].mxu0
        %v1518 = vadd.f32 0.0, %v1517
        %v1519 = vpop.f32.mrb[0].mxu0
        %1520 = vmatprep.mubr.f32.mxu0 0.0
        %1521 = vmatmul.mubr.f32.gmra.mrb[0].mxu0 %v1419
        %v1522 = vpop.f32.mrb[0].mxu0
        %v1523 = vadd.f32 0.0, %v1522
        %v1524 = vpop.f32.mrb[0].mxu0
        %1525 = vmatprep.mubr.f32.mxu0 0.0
        %1526 = vmatmul.mubr.f32.gmra.mrb[0].mxu0 %v1420
        %v1527 = vpop.f32.mrb[0].mxu0
        %v1528 = vadd.f32 0.0, %v1527
        %v1529 = vpop.f32.mrb[0].mxu0
        %1530 = vmatprep.mubr.f32.mxu0 0.0
        %1531 = vmatmul.mubr.f32.gmra.mrb[0].mxu0 %v1421
        %v1532 = vpop.f32.mrb[0].mxu0
        %v1533 = vadd.f32 0.0, %v1532
        %v1534 = vpop.f32.mrb[0].mxu0
        %1535 = vmatprep.mubr.f32.mxu0 0.0
        %1536 = vmatmul.mubr.f32.gmra.mrb[0].mxu0 %v1422
        %v1537 = vpop.f32.mrb[0].mxu0
        %v1538 = vadd.f32 0.0, %v1537
        %v1539 = vpop.f32.mrb[0].mxu0
        %1540 = vmatprep.mubr.f32.mxu0 0.0
        %1541 = vmatmul.mubr.f32.gmra.mrb[0].mxu0 %v1423
        %v1542 = vpop.f32.mrb[0].mxu0
        %v1543 = vadd.f32 0.0, %v1542
        %v1544 = vpop.f32.mrb[0].mxu0
        %1545 = vdwg.mxu0
        %v1546 = vadd.f32 %v1408, %v1508
        %v1547 = vadd.f32 %v1409, %v1513
        %v1548 = vadd.f32 %v1410, %v1518
        %v1549 = vadd.f32 %v1411, %v1523
        %v1550 = vadd.f32 %v1412, %v1528
        %v1551 = vadd.f32 %v1413, %v1533
        %v1552 = vadd.f32 %v1414, %v1538
        %v1553 = vadd.f32 %v1415, %v1543
        %1554 = vst [vmem:[#allocation5] sm:$0xff] %v1546
        %1555 = vst [vmem:[#allocation5 + $0x8] sm:$0xff] %v1547
        %1556 = vst [vmem:[#allocation5 + $0x10] sm:$0xff] %v1548
        %1557 = vst [vmem:[#allocation5 + $0x18] sm:$0xff] %v1549
        %1558 = vst [vmem:[#allocation5 + $0x20] sm:$0xff] %v1550
        %1559 = vst [vmem:[#allocation5 + $0x28] sm:$0xff] %v1551
        %1560 = vst [vmem:[#allocation5 + $0x30] sm:$0xff] %v1552
        %1561 = vst [vmem:[#allocation5 + $0x38] sm:$0xff] %v1553
        %v1562 = vld [vmem:[#allocation5] sm:$0xff]
        %v1563 = vld [vmem:[#allocation5 + $0x8] sm:$0xff]
        %v1564 = vld [vmem:[#allocation5 + $0x10] sm:$0xff]
        %v1565 = vld [vmem:[#allocation5 + $0x18] sm:$0xff]
        %v1566 = vld [vmem:[#allocation5 + $0x20] sm:$0xff]
        %v1567 = vld [vmem:[#allocation5 + $0x28] sm:$0xff]
        %v1568 = vld [vmem:[#allocation5 + $0x30] sm:$0xff]
        %v1569 = vld [vmem:[#allocation5 + $0x38] sm:$0xff]
        %v1570 = vld [vmem:[#allocation4 + $0x2] sm:$0xff]
        %v1571 = vld [vmem:[#allocation4 + $0x12] sm:$0xff]
        %v1572 = vld [vmem:[#allocation4 + $0x22] sm:$0xff]
        %v1573 = vld [vmem:[#allocation4 + $0x32] sm:$0xff]
        %v1574 = vld [vmem:[#allocation4 + $0x42] sm:$0xff]
        %v1575 = vld [vmem:[#allocation4 + $0x52] sm:$0xff]
        %v1576 = vld [vmem:[#allocation4 + $0x62] sm:$0xff]
        %v1577 = vld [vmem:[#allocation4 + $0x72] sm:$0xff]
        %s1578 = scalar_lea.vmem [#allocation12], 256
        %v1579 = vld [vmem:[%s1578] sm:$0xff]
        %v1580 = vld [vmem:[%s1578 + $0x8] sm:$0xff]
        %v1581 = vld [vmem:[%s1578 + $0x10] sm:$0xff]
        %v1582 = vld [vmem:[%s1578 + $0x18] sm:$0xff]
        %v1583 = vld [vmem:[%s1578 + $0x20] sm:$0xff]
        %v1584 = vld [vmem:[%s1578 + $0x28] sm:$0xff]
        %v1585 = vld [vmem:[%s1578 + $0x30] sm:$0xff]
        %v1586 = vld [vmem:[%s1578 + $0x38] sm:$0xff]
        %v1587 = vld [vmem:[%s1578 + $0x40] sm:$0xff]
        %v1588 = vld [vmem:[%s1578 + $0x48] sm:$0xff]
        %v1589 = vld [vmem:[%s1578 + $0x50] sm:$0xff]
        %v1590 = vld [vmem:[%s1578 + $0x58] sm:$0xff]
        %v1591 = vld [vmem:[%s1578 + $0x60] sm:$0xff]
        %v1592 = vld [vmem:[%s1578 + $0x68] sm:$0xff]
        %v1593 = vld [vmem:[%s1578 + $0x70] sm:$0xff]
        %v1594 = vld [vmem:[%s1578 + $0x78] sm:$0xff]
        %1595 = vmatprep.subr.mxu0 0.0
        %1596 = vmatpush1.msra.mxu0 %v1579
        %1597 = vmatprep.subr.mxu0 0.0
        %1598 = vmatpush1.msra.mxu0 %v1580
        %1599 = vmatprep.subr.mxu0 0.0
        %1600 = vmatpush1.msra.mxu0 %v1581
        %1601 = vmatprep.subr.mxu0 0.0
        %1602 = vmatpush1.msra.mxu0 %v1582
        %1603 = vmatprep.subr.mxu0 0.0
        %1604 = vmatpush1.msra.mxu0 %v1583
        %1605 = vmatprep.subr.mxu0 0.0
        %1606 = vmatpush1.msra.mxu0 %v1584
        %1607 = vmatprep.subr.mxu0 0.0
        %1608 = vmatpush1.msra.mxu0 %v1585
        %1609 = vmatprep.subr.mxu0 0.0
        %1610 = vmatpush1.msra.mxu0 %v1586
        %1611 = vmatprep.subr.mxu0 0.0
        %1612 = vmatpush1.msra.mxu0 %v1587
        %1613 = vmatprep.subr.mxu0 0.0
        %1614 = vmatpush1.msra.mxu0 %v1588
        %1615 = vmatprep.subr.mxu0 0.0
        %1616 = vmatpush1.msra.mxu0 %v1589
        %1617 = vmatprep.subr.mxu0 0.0
        %1618 = vmatpush1.msra.mxu0 %v1590
        %1619 = vmatprep.subr.mxu0 0.0
        %1620 = vmatpush1.msra.mxu0 %v1591
        %1621 = vmatprep.subr.mxu0 0.0
        %1622 = vmatpush1.msra.mxu0 %v1592
        %1623 = vmatprep.subr.mxu0 0.0
        %1624 = vmatpush1.msra.mxu0 %v1593
        %1625 = vmatprep.subr.mxu0 0.0
        %1626 = vmatpush1.msra.mxu0 %v1594
        %1627 = vmatprep.subr.mxu0 0.0
        %1628 = vmatpush1.msra.mxu0 0.0
        %1629 = vmatprep.subr.mxu0 0.0
        %1630 = vmatpush1.msra.mxu0 0.0
        %1631 = vmatprep.subr.mxu0 0.0
        %1632 = vmatpush1.msra.mxu0 0.0
        %1633 = vmatprep.subr.mxu0 0.0
        %1634 = vmatpush1.msra.mxu0 0.0
        %1635 = vmatprep.subr.mxu0 0.0
        %1636 = vmatpush1.msra.mxu0 0.0
        %1637 = vmatprep.subr.mxu0 0.0
        %1638 = vmatpush1.msra.mxu0 0.0
        %1639 = vmatprep.subr.mxu0 0.0
        %1640 = vmatpush1.msra.mxu0 0.0
        %1641 = vmatprep.subr.mxu0 0.0
        %1642 = vmatpush1.msra.mxu0 0.0
        %1643 = vmatprep.subr.mxu0 0.0
        %1644 = vmatpush1.msra.mxu0 0.0
        %1645 = vmatprep.subr.mxu0 0.0
        %1646 = vmatpush1.msra.mxu0 0.0
        %1647 = vmatprep.subr.mxu0 0.0
        %1648 = vmatpush1.msra.mxu0 0.0
        %1649 = vmatprep.subr.mxu0 0.0
        %1650 = vmatpush1.msra.mxu0 0.0
        %1651 = vmatprep.subr.mxu0 0.0
        %1652 = vmatpush1.msra.mxu0 0.0
        %1653 = vmatprep.subr.mxu0 0.0
        %1654 = vmatpush1.msra.mxu0 0.0
        %1655 = vmatprep.subr.mxu0 0.0
        %1656 = vmatpush1.msra.mxu0 0.0
        %1657 = vmatprep.subr.mxu0 0.0
        %1658 = vmatpush1.msra.mxu0 0.0
        %1659 = vmatprep.mubr.f32.mxu0 0.0
        %1660 = vmatmul.mubr.f32.gmra.mrb[0].mxu0 %v1570
        %v1661 = vpop.f32.mrb[0].mxu0
        %v1662 = vadd.f32 0.0, %v1661
        %v1663 = vpop.f32.mrb[0].mxu0
        %1664 = vmatprep.mubr.f32.mxu0 0.0
        %1665 = vmatmul.mubr.f32.gmra.mrb[0].mxu0 %v1571
        %v1666 = vpop.f32.mrb[0].mxu0
        %v1667 = vadd.f32 0.0, %v1666
        %v1668 = vpop.f32.mrb[0].mxu0
        %1669 = vmatprep.mubr.f32.mxu0 0.0
        %1670 = vmatmul.mubr.f32.gmra.mrb[0].mxu0 %v1572
        %v1671 = vpop.f32.mrb[0].mxu0
        %v1672 = vadd.f32 0.0, %v1671
        %v1673 = vpop.f32.mrb[0].mxu0
        %1674 = vmatprep.mubr.f32.mxu0 0.0
        %1675 = vmatmul.mubr.f32.gmra.mrb[0].mxu0 %v1573
        %v1676 = vpop.f32.mrb[0].mxu0
        %v1677 = vadd.f32 0.0, %v1676
        %v1678 = vpop.f32.mrb[0].mxu0
        %1679 = vmatprep.mubr.f32.mxu0 0.0
        %1680 = vmatmul.mubr.f32.gmra.mrb[0].mxu0 %v1574
        %v1681 = vpop.f32.mrb[0].mxu0
        %v1682 = vadd.f32 0.0, %v1681
        %v1683 = vpop.f32.mrb[0].mxu0
        %1684 = vmatprep.mubr.f32.mxu0 0.0
        %1685 = vmatmul.mubr.f32.gmra.mrb[0].mxu0 %v1575
        %v1686 = vpop.f32.mrb[0].mxu0
        %v1687 = vadd.f32 0.0, %v1686
        %v1688 = vpop.f32.mrb[0].mxu0
        %1689 = vmatprep.mubr.f32.mxu0 0.0
        %1690 = vmatmul.mubr.f32.gmra.mrb[0].mxu0 %v1576
        %v1691 = vpop.f32.mrb[0].mxu0
        %v1692 = vadd.f32 0.0, %v1691
        %v1693 = vpop.f32.mrb[0].mxu0
        %1694 = vmatprep.mubr.f32.mxu0 0.0
        %1695 = vmatmul.mubr.f32.gmra.mrb[0].mxu0 %v1577
        %v1696 = vpop.f32.mrb[0].mxu0
        %v1697 = vadd.f32 0.0, %v1696
        %v1698 = vpop.f32.mrb[0].mxu0
        %1699 = vdwg.mxu0
        %v1700 = vadd.f32 %v1562, %v1662
        %v1701 = vadd.f32 %v1563, %v1667
        %v1702 = vadd.f32 %v1564, %v1672
        %v1703 = vadd.f32 %v1565, %v1677
        %v1704 = vadd.f32 %v1566, %v1682
        %v1705 = vadd.f32 %v1567, %v1687
        %v1706 = vadd.f32 %v1568, %v1692
        %v1707 = vadd.f32 %v1569, %v1697
        %1708 = vst [vmem:[#allocation5] sm:$0xff] %v1700
        %1709 = vst [vmem:[#allocation5 + $0x8] sm:$0xff] %v1701
        %1710 = vst [vmem:[#allocation5 + $0x10] sm:$0xff] %v1702
        %1711 = vst [vmem:[#allocation5 + $0x18] sm:$0xff] %v1703
        %1712 = vst [vmem:[#allocation5 + $0x20] sm:$0xff] %v1704
        %1713 = vst [vmem:[#allocation5 + $0x28] sm:$0xff] %v1705
        %1714 = vst [vmem:[#allocation5 + $0x30] sm:$0xff] %v1706
        %1715 = vst [vmem:[#allocation5 + $0x38] sm:$0xff] %v1707
        %v1716 = vld [vmem:[#allocation5] sm:$0xff]
        %v1717 = vld [vmem:[#allocation5 + $0x8] sm:$0xff]
        %v1718 = vld [vmem:[#allocation5 + $0x10] sm:$0xff]
        %v1719 = vld [vmem:[#allocation5 + $0x18] sm:$0xff]
        %v1720 = vld [vmem:[#allocation5 + $0x20] sm:$0xff]
        %v1721 = vld [vmem:[#allocation5 + $0x28] sm:$0xff]
        %v1722 = vld [vmem:[#allocation5 + $0x30] sm:$0xff]
        %v1723 = vld [vmem:[#allocation5 + $0x38] sm:$0xff]
        %v1724 = vld [vmem:[%s5] sm:$0x1]
        %v1726 = vlaneseq
        %v1727 = vshrl.u32 %v1726, 7
        %v1728 = vsub.s32 0, %v1727
        %v1729 = vrot.slane %v1724, %v1728
        %v1731 = vmul.f32 %v1716, %v1729
        %v1732 = vmul.f32 %v1717, %v1729
        %v1733 = vmul.f32 %v1718, %v1729
        %v1734 = vmul.f32 %v1719, %v1729
        %v1735 = vmul.f32 %v1720, %v1729
        %v1736 = vmul.f32 %v1721, %v1729
        %v1737 = vmul.f32 %v1722, %v1729
        %v1738 = vmul.f32 %v1723, %v1729
        %v1739 = vld [vmem:[%s6] sm:$0x1]
        %v1741 = vlaneseq
        %v1742 = vshrl.u32 %v1741, 7
        %v1743 = vsub.s32 0, %v1742
        %v1744 = vrot.slane %v1739, %v1743
        %v1746 = vadd.f32 %v1731, %v1744
        %v1747 = vadd.f32 %v1732, %v1744
        %v1748 = vadd.f32 %v1733, %v1744
        %v1749 = vadd.f32 %v1734, %v1744
        %v1750 = vadd.f32 %v1735, %v1744
        %v1751 = vadd.f32 %v1736, %v1744
        %v1752 = vadd.f32 %v1737, %v1744
        %v1753 = vadd.f32 %v1738, %v1744
        %v1754 = vmax.f32 %v1746, 0.0
        %v1755 = vmax.f32 %v1747, 0.0
        %v1756 = vmax.f32 %v1748, 0.0
        %v1757 = vmax.f32 %v1749, 0.0
        %v1758 = vmax.f32 %v1750, 0.0
        %v1759 = vmax.f32 %v1751, 0.0
        %v1760 = vmax.f32 %v1752, 0.0
        %v1761 = vmax.f32 %v1753, 0.0
        %1762 = vst [vmem:[#allocation5] sm:$0xff] %v1754
        %1763 = vst [vmem:[#allocation5 + $0x8] sm:$0xff] %v1755
        %1764 = vst [vmem:[#allocation5 + $0x10] sm:$0xff] %v1756
        %1765 = vst [vmem:[#allocation5 + $0x18] sm:$0xff] %v1757
        %1766 = vst [vmem:[#allocation5 + $0x20] sm:$0xff] %v1758
        %1767 = vst [vmem:[#allocation5 + $0x28] sm:$0xff] %v1759
        %1768 = vst [vmem:[#allocation5 + $0x30] sm:$0xff] %v1760
        %1769 = vst [vmem:[#allocation5 + $0x38] sm:$0xff] %v1761
        %v1770 = vld [vmem:[#allocation5] ss:$8 sm:$0xf]
        %v1771 = vld [vmem:[#allocation5] ss:$8 sm:$0xf0]
        %v1772 = vor.u32 %v1770, %v1771
        %s1773 = scalar_lea.vmem [#allocation5], 1
        %v1774 = vld [vmem:[%s1773] ss:$8 sm:$0xf]
        %v1775 = vld [vmem:[%s1773] ss:$8 sm:$0xf0]
        %v1776 = vor.u32 %v1774, %v1775
        %v1777 = vmax.f32 %v1772, %v1776
        %1778 = vrot.lane.b32.xlu0 %v1777, 112
        %v1779 = vpop.permute.xlu0 %1778
        %v1780 = vmax.f32 %v1777, %v1779
        %1781 = vst [vmem:[#allocation6] sm:$0xff] %v1780
        %s1782 = scalar_lea.vmem [#allocation5], 2
        %v1783 = vld [vmem:[%s1782] ss:$8 sm:$0xf]
        %v1784 = vld [vmem:[%s1782] ss:$8 sm:$0xf0]
        %v1785 = vor.u32 %v1783, %v1784
        %s1786 = scalar_lea.vmem [#allocation5], 3
        %v1787 = vld [vmem:[%s1786] ss:$8 sm:$0xf]
        %v1788 = vld [vmem:[%s1786] ss:$8 sm:$0xf0]
        %v1789 = vor.u32 %v1787, %v1788
        %v1790 = vmax.f32 %v1785, %v1789
        %1791 = vrot.lane.b32.xlu0 %v1790, 112
        %v1792 = vpop.permute.xlu0 %1791
        %v1793 = vmax.f32 %v1790, %v1792
        %1794 = vst [vmem:[#allocation6 + $0x8] sm:$0xff] %v1793
        %s1795 = scalar_lea.vmem [#allocation5], 4
        %v1796 = vld [vmem:[%s1795] ss:$8 sm:$0xf]
        %v1797 = vld [vmem:[%s1795] ss:$8 sm:$0xf0]
        %v1798 = vor.u32 %v1796, %v1797
        %s1799 = scalar_lea.vmem [#allocation5], 5
        %v1800 = vld [vmem:[%s1799] ss:$8 sm:$0xf]
        %v1801 = vld [vmem:[%s1799] ss:$8 sm:$0xf0]
        %v1802 = vor.u32 %v1800, %v1801
        %v1803 = vmax.f32 %v1798, %v1802
        %1804 = vrot.lane.b32.xlu0 %v1803, 112
        %v1805 = vpop.permute.xlu0 %1804
        %v1806 = vmax.f32 %v1803, %v1805
        %1807 = vst [vmem:[#allocation6 + $0x10] sm:$0xff] %v1806
        %s1808 = scalar_lea.vmem [#allocation5], 6
        %v1809 = vld [vmem:[%s1808] ss:$8 sm:$0xf]
        %v1810 = vld [vmem:[%s1808] ss:$8 sm:$0xf0]
        %v1811 = vor.u32 %v1809, %v1810
        %s1812 = scalar_lea.vmem [#allocation5], 7
        %v1813 = vld [vmem:[%s1812] ss:$8 sm:$0xf]
        %v1814 = vld [vmem:[%s1812] ss:$8 sm:$0xf0]
        %v1815 = vor.u32 %v1813, %v1814
        %v1816 = vmax.f32 %v1811, %v1815
        %1817 = vrot.lane.b32.xlu0 %v1816, 112
        %v1818 = vpop.permute.xlu0 %1817
        %v1819 = vmax.f32 %v1816, %v1818
        %1820 = vst [vmem:[#allocation6 + $0x18] sm:$0xff] %v1819
        %v1821 = vld [vmem:[#allocation6] sm:$0xff]
        %v1822 = vld [vmem:[#allocation6 + $0x8] sm:$0xff]
        %v1823 = vld [vmem:[#allocation6 + $0x10] sm:$0xff]
        %v1824 = vld [vmem:[#allocation6 + $0x18] sm:$0xff]
        %v1825 = vld [vmem:[#allocation13] sm:$0xff]
        %v1826 = vld [vmem:[#allocation13 + $0x8] sm:$0xff]
        %v1827 = vld [vmem:[#allocation13 + $0x10] sm:$0xff]
        %v1828 = vld [vmem:[#allocation13 + $0x18] sm:$0xff]
        %v1829 = vld [vmem:[#allocation13 + $0x20] sm:$0xff]
        %v1830 = vld [vmem:[#allocation13 + $0x28] sm:$0xff]
        %v1831 = vld [vmem:[#allocation13 + $0x30] sm:$0xff]
        %v1832 = vld [vmem:[#allocation13 + $0x38] sm:$0xff]
        %v1833 = vld [vmem:[#allocation13 + $0x40] sm:$0xff]
        %v1834 = vld [vmem:[#allocation13 + $0x48] sm:$0xff]
        %v1835 = vld [vmem:[#allocation13 + $0x50] sm:$0xff]
        %v1836 = vld [vmem:[#allocation13 + $0x58] sm:$0xff]
        %v1837 = vld [vmem:[#allocation13 + $0x60] sm:$0xff]
        %v1838 = vld [vmem:[#allocation13 + $0x68] sm:$0xff]
        %v1839 = vld [vmem:[#allocation13 + $0x70] sm:$0xff]
        %v1840 = vld [vmem:[#allocation13 + $0x78] sm:$0xff]
        %v1841 = vld [vmem:[#allocation13 + $0x80] sm:$0xff]
        %v1842 = vld [vmem:[#allocation13 + $0x88] sm:$0xff]
        %v1843 = vld [vmem:[#allocation13 + $0x90] sm:$0xff]
        %v1844 = vld [vmem:[#allocation13 + $0x98] sm:$0xff]
        %v1845 = vld [vmem:[#allocation13 + $0xa0] sm:$0xff]
        %v1846 = vld [vmem:[#allocation13 + $0xa8] sm:$0xff]
        %v1847 = vld [vmem:[#allocation13 + $0xb0] sm:$0xff]
        %v1848 = vld [vmem:[#allocation13 + $0xb8] sm:$0xff]
        %v1849 = vld [vmem:[#allocation13 + $0xc0] sm:$0xff]
        %v1850 = vld [vmem:[#allocation13 + $0xc8] sm:$0xff]
        %v1851 = vld [vmem:[#allocation13 + $0xd0] sm:$0xff]
        %v1852 = vld [vmem:[#allocation13 + $0xd8] sm:$0xff]
        %v1853 = vld [vmem:[#allocation13 + $0xe0] sm:$0xff]
        %v1854 = vld [vmem:[#allocation13 + $0xe8] sm:$0xff]
        %v1855 = vld [vmem:[#allocation13 + $0xf0] sm:$0xff]
        %v1856 = vld [vmem:[#allocation13 + $0xf8] sm:$0xff]
        %v1857 = vld [vmem:[#allocation13 + $0x100] sm:$0xff]
        %v1858 = vld [vmem:[#allocation13 + $0x108] sm:$0xff]
        %v1859 = vld [vmem:[#allocation13 + $0x110] sm:$0xff]
        %v1860 = vld [vmem:[#allocation13 + $0x118] sm:$0xff]
        %v1861 = vld [vmem:[#allocation13 + $0x120] sm:$0xff]
        %v1862 = vld [vmem:[#allocation13 + $0x128] sm:$0xff]
        %v1863 = vld [vmem:[#allocation13 + $0x130] sm:$0xff]
        %v1864 = vld [vmem:[#allocation13 + $0x138] sm:$0xff]
        %v1865 = vld [vmem:[#allocation13 + $0x140] sm:$0xff]
        %v1866 = vld [vmem:[#allocation13 + $0x148] sm:$0xff]
        %v1867 = vld [vmem:[#allocation13 + $0x150] sm:$0xff]
        %v1868 = vld [vmem:[#allocation13 + $0x158] sm:$0xff]
        %v1869 = vld [vmem:[#allocation13 + $0x160] sm:$0xff]
        %v1870 = vld [vmem:[#allocation13 + $0x168] sm:$0xff]
        %v1871 = vld [vmem:[#allocation13 + $0x170] sm:$0xff]
        %v1872 = vld [vmem:[#allocation13 + $0x178] sm:$0xff]
        %v1873 = vld [vmem:[#allocation13 + $0x180] sm:$0xff]
        %v1874 = vld [vmem:[#allocation13 + $0x188] sm:$0xff]
        %v1875 = vld [vmem:[#allocation13 + $0x190] sm:$0xff]
        %v1876 = vld [vmem:[#allocation13 + $0x198] sm:$0xff]
        %v1877 = vld [vmem:[#allocation13 + $0x1a0] sm:$0xff]
        %v1878 = vld [vmem:[#allocation13 + $0x1a8] sm:$0xff]
        %v1879 = vld [vmem:[#allocation13 + $0x1b0] sm:$0xff]
        %v1880 = vld [vmem:[#allocation13 + $0x1b8] sm:$0xff]
        %v1881 = vld [vmem:[#allocation13 + $0x1c0] sm:$0xff]
        %v1882 = vld [vmem:[#allocation13 + $0x1c8] sm:$0xff]
        %v1883 = vld [vmem:[#allocation13 + $0x1d0] sm:$0xff]
        %v1884 = vld [vmem:[#allocation13 + $0x1d8] sm:$0xff]
        %v1885 = vld [vmem:[#allocation13 + $0x1e0] sm:$0xff]
        %v1886 = vld [vmem:[#allocation13 + $0x1e8] sm:$0xff]
        %v1887 = vld [vmem:[#allocation13 + $0x1f0] sm:$0xff]
        %v1888 = vld [vmem:[#allocation13 + $0x1f8] sm:$0xff]
        %v1889 = vld [vmem:[%s8] sm:$0x1]
        %v1891 = vlaneseq
        %v1892 = vshrl.u32 %v1891, 7
        %v1893 = vsub.s32 0, %v1892
        %v1894 = vrot.slane %v1889, %v1893
        %1896 = vmatprep.subr.mxu0 0.0
        %1897 = vmatpush1.msra.mxu0 %v1825
        %1898 = vmatprep.subr.mxu0 0.0
        %1899 = vmatpush1.msra.mxu0 %v1826
        %1900 = vmatprep.subr.mxu0 0.0
        %1901 = vmatpush1.msra.mxu0 %v1827
        %1902 = vmatprep.subr.mxu0 0.0
        %1903 = vmatpush1.msra.mxu0 %v1828
        %1904 = vmatprep.subr.mxu0 0.0
        %1905 = vmatpush1.msra.mxu0 %v1829
        %1906 = vmatprep.subr.mxu0 0.0
        %1907 = vmatpush1.msra.mxu0 %v1830
        %1908 = vmatprep.subr.mxu0 0.0
        %1909 = vmatpush1.msra.mxu0 %v1831
        %1910 = vmatprep.subr.mxu0 0.0
        %1911 = vmatpush1.msra.mxu0 %v1832
        %1912 = vmatprep.subr.mxu0 0.0
        %1913 = vmatpush1.msra.mxu0 %v1833
        %1914 = vmatprep.subr.mxu0 0.0
        %1915 = vmatpush1.msra.mxu0 %v1834
        %1916 = vmatprep.subr.mxu0 0.0
        %1917 = vmatpush1.msra.mxu0 %v1835
        %1918 = vmatprep.subr.mxu0 0.0
        %1919 = vmatpush1.msra.mxu0 %v1836
        %1920 = vmatprep.subr.mxu0 0.0
        %1921 = vmatpush1.msra.mxu0 %v1837
        %1922 = vmatprep.subr.mxu0 0.0
        %1923 = vmatpush1.msra.mxu0 %v1838
        %1924 = vmatprep.subr.mxu0 0.0
        %1925 = vmatpush1.msra.mxu0 %v1839
        %1926 = vmatprep.subr.mxu0 0.0
        %1927 = vmatpush1.msra.mxu0 %v1840
        %1928 = vmatprep.subr.mxu0 0.0
        %1929 = vmatpush1.msra.mxu0 %v1841
        %1930 = vmatprep.subr.mxu0 0.0
        %1931 = vmatpush1.msra.mxu0 %v1842
        %1932 = vmatprep.subr.mxu0 0.0
        %1933 = vmatpush1.msra.mxu0 %v1843
        %1934 = vmatprep.subr.mxu0 0.0
        %1935 = vmatpush1.msra.mxu0 %v1844
        %1936 = vmatprep.subr.mxu0 0.0
        %1937 = vmatpush1.msra.mxu0 %v1845
        %1938 = vmatprep.subr.mxu0 0.0
        %1939 = vmatpush1.msra.mxu0 %v1846
        %1940 = vmatprep.subr.mxu0 0.0
        %1941 = vmatpush1.msra.mxu0 %v1847
        %1942 = vmatprep.subr.mxu0 0.0
        %1943 = vmatpush1.msra.mxu0 %v1848
        %1944 = vmatprep.subr.mxu0 0.0
        %1945 = vmatpush1.msra.mxu0 %v1849
        %1946 = vmatprep.subr.mxu0 0.0
        %1947 = vmatpush1.msra.mxu0 %v1850
        %1948 = vmatprep.subr.mxu0 0.0
        %1949 = vmatpush1.msra.mxu0 %v1851
        %1950 = vmatprep.subr.mxu0 0.0
        %1951 = vmatpush1.msra.mxu0 %v1852
        %1952 = vmatprep.subr.mxu0 0.0
        %1953 = vmatpush1.msra.mxu0 %v1853
        %1954 = vmatprep.subr.mxu0 0.0
        %1955 = vmatpush1.msra.mxu0 %v1854
        %1956 = vmatprep.subr.mxu0 0.0
        %1957 = vmatpush1.msra.mxu0 %v1855
        %1958 = vmatprep.subr.mxu0 0.0
        %1959 = vmatpush1.msra.mxu0 %v1856
        %1960 = vmatprep.mubr.f32.mxu0 %v1822
        %1961 = vmatmul.mubr.f32.gmra.mrb[0].mxu0 %v1821
        %v1962 = vpop.f32.mrb[0].mxu0
        %v1963 = vadd.f32 %v1894, %v1962
        %v1964 = vpop.f32.mrb[0].mxu0
        %1965 = vdwg.mxu0
        %1966 = vmatprep.subr.mxu0 0.0
        %1967 = vmatpush1.msra.mxu0 %v1857
        %1968 = vmatprep.subr.mxu0 0.0
        %1969 = vmatpush1.msra.mxu0 %v1858
        %1970 = vmatprep.subr.mxu0 0.0
        %1971 = vmatpush1.msra.mxu0 %v1859
        %1972 = vmatprep.subr.mxu0 0.0
        %1973 = vmatpush1.msra.mxu0 %v1860
        %1974 = vmatprep.subr.mxu0 0.0
        %1975 = vmatpush1.msra.mxu0 %v1861
        %1976 = vmatprep.subr.mxu0 0.0
        %1977 = vmatpush1.msra.mxu0 %v1862
        %1978 = vmatprep.subr.mxu0 0.0
        %1979 = vmatpush1.msra.mxu0 %v1863
        %1980 = vmatprep.subr.mxu0 0.0
        %1981 = vmatpush1.msra.mxu0 %v1864
        %1982 = vmatprep.subr.mxu0 0.0
        %1983 = vmatpush1.msra.mxu0 %v1865
        %1984 = vmatprep.subr.mxu0 0.0
        %1985 = vmatpush1.msra.mxu0 %v1866
        %1986 = vmatprep.subr.mxu0 0.0
        %1987 = vmatpush1.msra.mxu0 %v1867
        %1988 = vmatprep.subr.mxu0 0.0
        %1989 = vmatpush1.msra.mxu0 %v1868
        %1990 = vmatprep.subr.mxu0 0.0
        %1991 = vmatpush1.msra.mxu0 %v1869
        %1992 = vmatprep.subr.mxu0 0.0
        %1993 = vmatpush1.msra.mxu0 %v1870
        %1994 = vmatprep.subr.mxu0 0.0
        %1995 = vmatpush1.msra.mxu0 %v1871
        %1996 = vmatprep.subr.mxu0 0.0
        %1997 = vmatpush1.msra.mxu0 %v1872
        %1998 = vmatprep.subr.mxu0 0.0
        %1999 = vmatpush1.msra.mxu0 %v1873
        %2000 = vmatprep.subr.mxu0 0.0
        %2001 = vmatpush1.msra.mxu0 %v1874
        %2002 = vmatprep.subr.mxu0 0.0
        %2003 = vmatpush1.msra.mxu0 %v1875
        %2004 = vmatprep.subr.mxu0 0.0
        %2005 = vmatpush1.msra.mxu0 %v1876
        %2006 = vmatprep.subr.mxu0 0.0
        %2007 = vmatpush1.msra.mxu0 %v1877
        %2008 = vmatprep.subr.mxu0 0.0
        %2009 = vmatpush1.msra.mxu0 %v1878
        %2010 = vmatprep.subr.mxu0 0.0
        %2011 = vmatpush1.msra.mxu0 %v1879
        %2012 = vmatprep.subr.mxu0 0.0
        %2013 = vmatpush1.msra.mxu0 %v1880
        %2014 = vmatprep.subr.mxu0 0.0
        %2015 = vmatpush1.msra.mxu0 %v1881
        %2016 = vmatprep.subr.mxu0 0.0
        %2017 = vmatpush1.msra.mxu0 %v1882
        %2018 = vmatprep.subr.mxu0 0.0
        %2019 = vmatpush1.msra.mxu0 %v1883
        %2020 = vmatprep.subr.mxu0 0.0
        %2021 = vmatpush1.msra.mxu0 %v1884
        %2022 = vmatprep.subr.mxu0 0.0
        %2023 = vmatpush1.msra.mxu0 %v1885
        %2024 = vmatprep.subr.mxu0 0.0
        %2025 = vmatpush1.msra.mxu0 %v1886
        %2026 = vmatprep.subr.mxu0 0.0
        %2027 = vmatpush1.msra.mxu0 %v1887
        %2028 = vmatprep.subr.mxu0 0.0
        %2029 = vmatpush1.msra.mxu0 %v1888
        %2030 = vmatprep.mubr.f32.mxu0 %v1824
        %2031 = vmatmul.mubr.f32.gmra.mrb[0].mxu0 %v1823
        %v2032 = vpop.f32.mrb[0].mxu0
        %v2033 = vadd.f32 %v1963, %v2032
        %v2034 = vpop.f32.mrb[0].mxu0
        %2035 = vdwg.mxu0
        %2036 = vst [vmem:[%s395] sm:$0xff] %v2033
        %s2037 = sand.u32 %s230, 1
        %s2038 = scalar_lea.sflag [#allocation9], %s2037
        %s2039 = sand.u32 %s230, 1
        %s2040 = smul.addr %s2039, 8
        %s2041 = scalar_lea.vmem [#allocation15], %s2040
        // Predicated region
        $region73: #{tpu_custom_call.1} parent=55 // pred_check
          %p2042 = pneg %p240
        $region74: #{tpu_custom_call.1} parent=55 // pred_check_branch
          %2044 = sbr.rel (%p2042) target = $region76
        $region75: #{tpu_custom_call.1} parent=55 // pred_region
          %s2046 = ssub.s32 128, 128
          %2047 = vsyncadd %s2038, %s2046
          %s2048 = smul.addr %s28, 128
          %s2049 = scalar_lea.hbm %s9, %s2048
          %s2051 = sshll.u32 %s2041, 4
          %s2052 = int_to_ptr.vmem [resolvable:$true] %s2051
          %2054 = dma.vmem_to_hbm [thread:$0]  %s2052, 128, %s2049, %s2038
        $region76: #{tpu_custom_call.1} parent=55 // pred_fallthru
          _
      $region56: #{tpu_custom_call.1} parent=5 // pred_fallthru
        _
      %p2055 = scmp.le.s32.totalorder 2, %s23
      // Predicated region
      $region77: #{tpu_custom_call.1} parent=5 // pred_check
        %p2056 = pneg %p2055
      $region78: #{tpu_custom_call.1} parent=5 // pred_check_branch
        %2058 = sbr.rel (%p2056) target = $region80
      $region79: #{tpu_custom_call.1} parent=5 // pred_region
        %s2059 = ssub.s32 %s23, 2
        // Predicated region
        $region81: #{tpu_custom_call.1} parent=79 // pred_check
          %p2060 = pneg %p246
        $region82: #{tpu_custom_call.1} parent=79 // pred_check_branch
          %2062 = sbr.rel (%p2060) target = $region84
        $region83: #{tpu_custom_call.1} parent=79 // pred_region
          %s2063 = sand.u32 %s231, 1
          %s2064 = scalar_lea.sflag [#allocation9], %s2063
          %s2065 = sand.u32 %s231, 1
          %s2066 = smul.addr %s2065, 8
          %s2067 = scalar_lea.vmem [#allocation15], %s2066
          %2068 = dma.done %s2064, 128
        $region84: #{tpu_custom_call.1} parent=79 // pred_fallthru
          _
      $region80: #{tpu_custom_call.1} parent=5 // pred_fallthru
        _
    $region6: #{tpu_custom_call.1} parent=1 // loop_footer
      %s27 = sadd.s32 1, %s23
    $region7: #{tpu_custom_call.1} parent=1 // loop_footer_branch
      %22 = sbr.rel target = $region3
    $region8: #{tpu_custom_call.1} parent=1 // loop_exit
      _
    %2069 = vsyncpa [#allocation8], 1
    %s2070 = scalar_lea.sflag [#allocation8], 1
    %2071 = vsyncpa %s2070, 1
    %2072 = vsyncpa [#allocation11], 1
    %2073 = vsyncpa [#allocation14], 1
    %2074 = vsyncpa [#allocation9], 1
    %s2075 = scalar_lea.sflag [#allocation9], 1
    %2076 = vsyncpa %s2075, 1

</llo_original>
